<compile_context>
chip_gen: v6e
topology: v6e:2x2x1
jax: 0.10.0
libtpu: 0.0.40
codegen_flags: <defaults>
</compile_context>

<pallas_src>
import functools
from math import sqrt

import jax
import jax.numpy as jnp
from jax import lax
from jax.experimental import pallas as pl
from jax.experimental.pallas import tpu as pltpu


# ----------------------------------------------------------------------------- kernels


def _attn_single_pass_kernel(q_ref, k_ref, v_ref, o_ref, *, scale, mxu_dtype):
    """tk == S: whole KV sequence resident -> one-pass softmax per head.

    Blocks (native layout, no transposes):
      q_ref: (1, tq, H, E)  k_ref: (1, S, H, E)  v_ref: (1, S, H, D)  o_ref: (1, tq, H, D)
    """
    num_heads = q_ref.shape[2]
    bf16_softmax = jnp.dtype(mxu_dtype) == jnp.dtype(jnp.bfloat16)

    # Static Python loop: H is small (4-8 heads); a traced head index would force
    # dynamic middle-axis slicing for no benefit.
    for h in range(num_heads):
        # Fold the softmax scale into Q: O(tq*E) mults instead of O(tq*S).
        q = (q_ref[0, :, h, :].astype(jnp.float32) * scale).astype(mxu_dtype)  # (tq, E)
        k = k_ref[0, :, h, :].astype(mxu_dtype)                                # (S, E)
        v = v_ref[0, :, h, :].astype(mxu_dtype)                                # (S, D)

        # scores[l, s] = sum_e q[l, e] * k[s, e] (contract E on both; no k.T copy).
        s = lax.dot_general(q, k, (((1,), (1,)), ((), ())),
                            preferred_element_type=jnp.float32)                # (tq, S)

        m = jnp.max(s, axis=-1, keepdims=True)                                 # (tq, 1)
        if bf16_softmax:
            # bf16 exp over the large (tq, S) tile (v6e/v7x bf16 EUP path); p is
            # already in the MXU dtype -> no extra cast before the PV matmul.
            p = jnp.exp((s - m).astype(jnp.bfloat16))
        else:
            p = jnp.exp(s - m)
        l = jnp.sum(p.astype(jnp.float32), axis=-1, keepdims=True)             # (tq, 1)

        pv = jnp.dot(p, v, preferred_element_type=jnp.float32)                 # (tq, D)
        # Exact normalization (denominator is only a (tq,1) vector -> division is free).
        o_ref[0, :, h, :] = (pv / l).astype(o_ref.dtype)

    # NOTE: nan_to_num omitted -- max-subtracted denominator >= 1 for finite inputs,
    # so A never contains NaN on the mask_flag=False path.
    # TODO(synk): dropout (p=0.1) omitted -- module evaluated in eval mode (identity).


def _attn_flash_kernel(q_ref, k_ref, v_ref, o_ref, q_sc, m_sc, l_sc, acc_sc,
                       *, scale, mxu_dtype):
    """tk < S: online (flash) softmax over the KV grid axis (innermost, 'arbitrary').

    Blocks:  q_ref (1,tq,H,E)  k_ref (1,tk,H,E)  v_ref (1,tk,H,D)  o_ref (1,tq,H,D)
    Scratch: q_sc (tq,H,E) scaled-Q cache; m_sc/l_sc (H,tq,1); acc_sc (H,tq,D)
    """
    ki = pl.program_id(2)
    num_heads = q_ref.shape[2]
    bf16_softmax = jnp.dtype(mxu_dtype) == jnp.dtype(jnp.bfloat16)

    @pl.when(ki == 0)
    def _init():
        # Q block is resident across all S//tk KV steps (index_map ignores ki);
        # scale it once here instead of on every KV step.
        q_sc[...] = (q_ref[0].astype(jnp.float32) * scale).astype(q_sc.dtype)
        m_sc[...] = jnp.full(m_sc.shape, -jnp.inf, jnp.float32)
        l_sc[...] = jnp.zeros(l_sc.shape, jnp.float32)
        acc_sc[...] = jnp.zeros(acc_sc.shape, jnp.float32)

    for h in range(num_heads):
        q = q_sc[:, h, :]                                                      # (tq, E)
        k = k_ref[0, :, h, :].astype(mxu_dtype)                                # (tk, E)
        v = v_ref[0, :, h, :].astype(mxu_dtype)                                # (tk, D)

        s = lax.dot_general(q, k, (((1,), (1,)), ((), ())),
                            preferred_element_type=jnp.float32)                # (tq, tk)

        m_prev = m_sc[h]                                                       # (tq, 1)
        m_new = jnp.maximum(m_prev, jnp.max(s, axis=-1, keepdims=True))
        alpha = jnp.exp(m_prev - m_new)
        if bf16_softmax:
            p = jnp.exp((s - m_new).astype(jnp.bfloat16))
        else:
            p = jnp.exp(s - m_new)

        l_sc[h] = alpha * l_sc[h] + jnp.sum(p.astype(jnp.float32), axis=-1, keepdims=True)
        acc_sc[h] = alpha * acc_sc[h] + jnp.dot(p, v, preferred_element_type=jnp.float32)
        m_sc[h] = m_new

    @pl.when(ki == pl.num_programs(2) - 1)
    def _finalize():
        for h in range(num_heads):
            o_ref[0, :, h, :] = (acc_sc[h] / l_sc[h]).astype(o_ref.dtype)


# ----------------------------------------------------------------------------- tiling


def _pick_tile(dim, cap, min_tile):
    """Largest divisor of dim that is <= cap, preferring multiples of min_tile."""
    if dim <= cap:
        return dim                                      # full extent always legal
    cap_aligned = (cap // min_tile) * min_tile
    for t in range(cap_aligned, min_tile - 1, -min_tile):
        if dim % t == 0:
            return t
    for t in range(min(cap, dim), 0, -1):               # guarded fallback (stays <= cap)
        if dim % t == 0:
            return t
    return dim


def _vmem_budget():
    """Generation-aware (vmem_limit_bytes, tile_budget_bytes)."""
    try:
        cap = int(getattr(pltpu.get_tpu_info(), "vmem_capacity_bytes", 128 * 1024 * 1024))
    except Exception:
        cap = 128 * 1024 * 1024                         # v5e/v6e default; v7x reports 64 MiB
    # ~75% of physical VMEM: 96 MiB on v5e/v6e, 48 MiB on v7x (never the full 64 MiB).
    limit = min(int(cap * 0.75), 112 * 1024 * 1024)
    # Headroom under the limit for compiler-internal scratch / score intermediates.
    return limit, int(limit * 0.8)


def _choose_tiles(L, S, H, E, D, itemsize, budget_bytes, min_tile):
    def footprint(tq, tk, flash):
        io = 2 * itemsize * H * (tq * E + tk * E + tk * D + tq * D)   # double-buffered blocks
        scores = 4 * tq * tk                                          # f32 scores (one head at a time)
        scratch = (4 * H * tq * (E + D + 2) + itemsize * tq * H * E) if flash else 0
        return io + scores + scratch

    # Prefer a single KV pass (tk == S): online-softmax rescale disappears entirely.
    for qcap in (1024, 512, 256, 128, 64, 32, 16, 8):
        tq = _pick_tile(L, qcap, min_tile)
        if footprint(tq, S, flash=False) <= budget_bytes:
            return tq, S
    # Otherwise flash over KV tiles.
    for kcap in (4096, 2048, 1024, 512, 256, 128, 64, 32, 16, 8):
        tk = _pick_tile(S, kcap, min_tile)
        for qcap in (512, 256, 128, 64, 32, 16, 8):
            tq = _pick_tile(L, qcap, min_tile)
            if footprint(tq, tk, flash=True) <= budget_bytes:
                return tq, tk
    raise ValueError("FullAttention blocks do not fit in the VMEM budget.")


# ----------------------------------------------------------------------------- wrapper


def full_attention(queries, keys, values, attn_mask=None, scale=None, *,
                   mxu_dtype=None, tile_q=None, tile_kv=None):
    """FullAttention forward (mask_flag=False, eval mode).

    queries: (B, L, H, E), keys: (B, S, H, E), values: (B, S, H, D) -> (B, L, H, D).
    mxu_dtype: optionally force bf16 matmul/exp compute (v6e/v7x fast path); default
               keeps the input dtype (exact for f32 inputs, native for bf16 inputs).
    """
    assert attn_mask is None, "mask_flag=False path: attn_mask must be None"
    B, L, H, E = queries.shape
    Bv, S, Hv, D = values.shape
    assert keys.shape == (B, S, H, E) and (Bv, Hv) == (B, H)
    scale = (1.0 / sqrt(E)) if scale is None else scale     # honor an explicit scale=0.0

    in_dtype = jnp.dtype(queries.dtype)
    mxu_dtype = in_dtype if mxu_dtype is None else jnp.dtype(mxu_dtype)
    itemsize = in_dtype.itemsize
    min_tile = 16 if itemsize < 4 else 8                    # bf16 packs 2 rows / sublane

    vmem_limit, tile_budget = _vmem_budget()
    tq, tk = _choose_tiles(L, S, H, E, D, itemsize, tile_budget, min_tile)
    if tile_q is not None:
        assert L % tile_q == 0, "tile_q must divide L"
        tq = int(tile_q)
    if tile_kv is not None:
        assert S % tile_kv == 0, "tile_kv must divide S"
        tk = int(tile_kv)
    # v7x megacore: keep the parallel sub-grid (B * L//tq) able to feed 2 TensorCores.
    if tile_q is None and B * (L // tq) < 2:
        for cand in (tq // 2, tq // 4, tq // 8):
            if cand >= 1 and L % cand == 0:
                tq = cand
                break

    grid = (B, L // tq, S // tk)
    single_pass = (tk == S)

    if single_pass:
        kernel = functools.partial(_attn_single_pass_kernel, scale=scale, mxu_dtype=mxu_dtype)
        scratch = []
    else:
        kernel = functools.partial(_attn_flash_kernel, scale=scale, mxu_dtype=mxu_dtype)
        scratch = [
            pltpu.VMEM((tq, H, E), mxu_dtype),       # scaled Q, cached across KV steps
            pltpu.VMEM((H, tq, 1), jnp.float32),     # running max
            pltpu.VMEM((H, tq, 1), jnp.float32),     # running denominator
            pltpu.VMEM((H, tq, D), jnp.float32),     # unnormalized output accumulator
        ]

    cost = pl.CostEstimate(
        flops=2 * B * H * L * S * (E + D),
        transcendentals=B * H * L * S,
        bytes_accessed=itemsize * (B * L * H * E + B * S * H * (E + D) + B * L * H * D),
    )

    return pl.pallas_call(
        kernel,
        out_shape=jax.ShapeDtypeStruct((B, L, H, D), in_dtype),
        grid_spec=pltpu.PrefetchScalarGridSpec(
            num_scalar_prefetch=0,
            grid=grid,
            in_specs=[
                pl.BlockSpec((1, tq, H, E), lambda b, qi, ki: (b, qi, 0, 0)),
                pl.BlockSpec((1, tk, H, E), lambda b, qi, ki: (b, ki, 0, 0)),
                pl.BlockSpec((1, tk, H, D), lambda b, qi, ki: (b, ki, 0, 0)),
            ],
            out_specs=pl.BlockSpec((1, tq, H, D), lambda b, qi, ki: (b, qi, 0, 0)),
            scratch_shapes=scratch,
        ),
        compiler_params=pltpu.CompilerParams(
            # batch and q-tile axes are independent (megacore sharding on v7x);
            # the KV axis is the online-softmax reduction -> must stay sequential.
            dimension_semantics=("parallel", "parallel", "arbitrary"),
            vmem_limit_bytes=vmem_limit,
        ),
        cost_estimate=cost,
    )(queries, keys, values)


# ----------------------------------------------------------------------------- test


def _reference(queries, keys, values, scale=None):
    E = queries.shape[-1]
    scale = (1.0 / sqrt(E)) if scale is None else scale
    # Precision.HIGHEST so the f32 reference is not degraded by TPU's default bf16
    # matmul passes (that was the source of the previous 1e-3 mismatch).
    scores = jnp.einsum("blhe,bshe->bhls", queries, keys, precision=lax.Precision.HIGHEST)
    a = jnp.nan_to_num(jax.nn.softmax(scale * scores, axis=-1))
    return jnp.einsum("bhls,bshd->blhd", a, values, precision=lax.Precision.HIGHEST)


if __name__ == "__main__":
    B, L, S, H, E, D = 2, 8, 8, 4, 32, 32
    key = jax.random.PRNGKey(0)
    kq, kk, kv = jax.random.split(key, 3)
    queries = jax.random.normal(kq, (B, L, H, E), dtype=jnp.float32)
    keys = jax.random.normal(kk, (B, S, H, E), dtype=jnp.float32)
    values = jax.random.normal(kv, (B, S, H, D), dtype=jnp.float32)

    ref = _reference(queries, keys, values)

    # Default path: tk == S -> single-pass softmax kernel, native layout, no transposes.
    out = jax.block_until_ready(full_attention(queries, keys, values, attn_mask=None))
    assert out.shape == (B, L, H, D)
    assert jnp.allclose(out, ref, atol=2e-3, rtol=2e-3), "single-pass kernel mismatch vs reference"

    # Forced multi-step KV path: exercises the online-softmax (flash) kernel.
    out_flash = jax.block_until_ready(
        full_attention(queries, keys, values, attn_mask=None, tile_q=L, tile_kv=S // 2))
    assert jnp.allclose(out_flash, ref, atol=2e-3, rtol=2e-3), "flash kernel mismatch vs reference"

    print("KERNEL_OK")
</pallas_src>

<mosaic_0001>
module attributes {stable_mosaic.version = 11 : i64} {
  func.func @_attn_single_pass_kernel(%arg0: i32, %arg1: i32, %arg2: i32, %arg3: memref<1x8x4x32xf32, #tpu.memory_space<vmem>>, %arg4: memref<1x8x4x32xf32, #tpu.memory_space<vmem>>, %arg5: memref<1x8x4x32xf32, #tpu.memory_space<vmem>>, %arg6: memref<1x8x4x32xf32, #tpu.memory_space<vmem>>) attributes {dimension_semantics = [#tpu.dimension_semantics<parallel>, #tpu.dimension_semantics<parallel>, #tpu.dimension_semantics<arbitrary>], iteration_bounds = array<i64: 2, 1, 1>, scalar_prefetch = 0 : i64, scratch_operands = 0 : i64, tpu.core_type = #tpu.core_type<tc>, window_params = [{transform_indices = @transform_0, window_bounds = array<i64: 1, 8, 4, 32>}, {transform_indices = @transform_1, window_bounds = array<i64: 1, 8, 4, 32>}, {transform_indices = @transform_2, window_bounds = array<i64: 1, 8, 4, 32>}, {transform_indices = @transform_3, window_bounds = array<i64: 1, 8, 4, 32>}]} {
    %c0 = arith.constant 0 : index
    %c0_0 = arith.constant 0 : index
    %c0_1 = arith.constant 0 : index
    %c0_2 = arith.constant 0 : index
    %0 = vector.load %arg3[%c0, %c0_0, %c0_1, %c0_2] : memref<1x8x4x32xf32, #tpu.memory_space<vmem>>, vector<1x8x1x32xf32>
    %1 = vector.shape_cast %0 : vector<1x8x1x32xf32> to vector<8x32xf32>
    %cst = arith.constant 0.176776692 : f32
    %2 = vector.broadcast %cst : f32 to vector<8x32xf32>
    %3 = arith.mulf %1, %2 : vector<8x32xf32>
    %c0_3 = arith.constant 0 : index
    %c0_4 = arith.constant 0 : index
    %c0_5 = arith.constant 0 : index
    %c0_6 = arith.constant 0 : index
    %4 = vector.load %arg4[%c0_3, %c0_4, %c0_5, %c0_6] : memref<1x8x4x32xf32, #tpu.memory_space<vmem>>, vector<1x8x1x32xf32>
    %5 = vector.shape_cast %4 : vector<1x8x1x32xf32> to vector<8x32xf32>
    %c0_7 = arith.constant 0 : index
    %c0_8 = arith.constant 0 : index
    %c0_9 = arith.constant 0 : index
    %c0_10 = arith.constant 0 : index
    %6 = vector.load %arg5[%c0_7, %c0_8, %c0_9, %c0_10] : memref<1x8x4x32xf32, #tpu.memory_space<vmem>>, vector<1x8x1x32xf32>
    %7 = vector.shape_cast %6 : vector<1x8x1x32xf32> to vector<8x32xf32>
    %cst_11 = arith.constant dense<0.000000e+00> : vector<8x8xf32>
    %8 = tpu.matmul %3, %5, %cst_11 {dimension_numbers = #tpu.dot_dimension_numbers<[1], [1], [0], [0], [0, 0, 1, 0], [], []>} : vector<8x32xf32>, vector<8x32xf32>, vector<8x8xf32> -> vector<8x8xf32>
    %cst_12 = arith.constant dense<0xFF800000> : vector<8xf32>
    %9 = vector.multi_reduction <maximumf>, %8, %cst_12 [1] : vector<8x8xf32> to vector<8xf32>
    %10 = vector.shape_cast %9 : vector<8xf32> to vector<8x1xf32>
    %11 = vector.broadcast %10 : vector<8x1xf32> to vector<8x8xf32>
    %12 = arith.subf %8, %11 : vector<8x8xf32>
    %13 = math.exp %12 : vector<8x8xf32>
    %cst_13 = arith.constant dense<0.000000e+00> : vector<8xf32>
    %14 = vector.multi_reduction <add>, %13, %cst_13 [1] : vector<8x8xf32> to vector<8xf32>
    %15 = vector.shape_cast %14 : vector<8xf32> to vector<8x1xf32>
    %cst_14 = arith.constant dense<0.000000e+00> : vector<8x32xf32>
    %16 = tpu.matmul %13, %7, %cst_14 {dimension_numbers = #tpu.dot_dimension_numbers<[1], [0], [0], [1], [0, 0, 1, 1], [], []>} : vector<8x8xf32>, vector<8x32xf32>, vector<8x32xf32> -> vector<8x32xf32>
    %17 = vector.broadcast %15 : vector<8x1xf32> to vector<8x32xf32>
    %18 = arith.divf %16, %17 : vector<8x32xf32>
    %c0_15 = arith.constant 0 : index
    %c0_16 = arith.constant 0 : index
    %c0_17 = arith.constant 0 : index
    %c0_18 = arith.constant 0 : index
    %19 = vector.load %arg6[%c0_15, %c0_16, %c0_17, %c0_18] : memref<1x8x4x32xf32, #tpu.memory_space<vmem>>, vector<1x8x1x32xf32>
    %20 = vector.shape_cast %19 : vector<1x8x1x32xf32> to vector<8x32xf32>
    %21 = vector.shape_cast %18 : vector<8x32xf32> to vector<1x8x1x32xf32>
    tpu.vector_store %arg6[%c0_15, %c0_16, %c0_17, %c0_18], %21 {strides = array<i32>} : memref<1x8x4x32xf32, #tpu.memory_space<vmem>>, vector<1x8x1x32xf32>,
    %c0_19 = arith.constant 0 : index
    %c0_20 = arith.constant 0 : index
    %c1 = arith.constant 1 : index
    %c0_21 = arith.constant 0 : index
    %22 = vector.load %arg3[%c0_19, %c0_20, %c1, %c0_21] : memref<1x8x4x32xf32, #tpu.memory_space<vmem>>, vector<1x8x1x32xf32>
    %23 = vector.shape_cast %22 : vector<1x8x1x32xf32> to vector<8x32xf32>
    %cst_22 = arith.constant 0.176776692 : f32
    %24 = vector.broadcast %cst_22 : f32 to vector<8x32xf32>
    %25 = arith.mulf %23, %24 : vector<8x32xf32>
    %c0_23 = arith.constant 0 : index
    %c0_24 = arith.constant 0 : index
    %c1_25 = arith.constant 1 : index
    %c0_26 = arith.constant 0 : index
    %26 = vector.load %arg4[%c0_23, %c0_24, %c1_25, %c0_26] : memref<1x8x4x32xf32, #tpu.memory_space<vmem>>, vector<1x8x1x32xf32>
    %27 = vector.shape_cast %26 : vector<1x8x1x32xf32> to vector<8x32xf32>
    %c0_27 = arith.constant 0 : index
    %c0_28 = arith.constant 0 : index
    %c1_29 = arith.constant 1 : index
    %c0_30 = arith.constant 0 : index
    %28 = vector.load %arg5[%c0_27, %c0_28, %c1_29, %c0_30] : memref<1x8x4x32xf32, #tpu.memory_space<vmem>>, vector<1x8x1x32xf32>
    %29 = vector.shape_cast %28 : vector<1x8x1x32xf32> to vector<8x32xf32>
    %cst_31 = arith.constant dense<0.000000e+00> : vector<8x8xf32>
    %30 = tpu.matmul %25, %27, %cst_31 {dimension_numbers = #tpu.dot_dimension_numbers<[1], [1], [0], [0], [0, 0, 1, 0], [], []>} : vector<8x32xf32>, vector<8x32xf32>, vector<8x8xf32> -> vector<8x8xf32>
    %cst_32 = arith.constant dense<0xFF800000> : vector<8xf32>
    %31 = vector.multi_reduction <maximumf>, %30, %cst_32 [1] : vector<8x8xf32> to vector<8xf32>
    %32 = vector.shape_cast %31 : vector<8xf32> to vector<8x1xf32>
    %33 = vector.broadcast %32 : vector<8x1xf32> to vector<8x8xf32>
    %34 = arith.subf %30, %33 : vector<8x8xf32>
    %35 = math.exp %34 : vector<8x8xf32>
    %cst_33 = arith.constant dense<0.000000e+00> : vector<8xf32>
    %36 = vector.multi_reduction <add>, %35, %cst_33 [1] : vector<8x8xf32> to vector<8xf32>
    %37 = vector.shape_cast %36 : vector<8xf32> to vector<8x1xf32>
    %cst_34 = arith.constant dense<0.000000e+00> : vector<8x32xf32>
    %38 = tpu.matmul %35, %29, %cst_34 {dimension_numbers = #tpu.dot_dimension_numbers<[1], [0], [0], [1], [0, 0, 1, 1], [], []>} : vector<8x8xf32>, vector<8x32xf32>, vector<8x32xf32> -> vector<8x32xf32>
    %39 = vector.broadcast %37 : vector<8x1xf32> to vector<8x32xf32>
    %40 = arith.divf %38, %39 : vector<8x32xf32>
    %c0_35 = arith.constant 0 : index
    %c0_36 = arith.constant 0 : index
    %c1_37 = arith.constant 1 : index
    %c0_38 = arith.constant 0 : index
    %41 = vector.load %arg6[%c0_35, %c0_36, %c1_37, %c0_38] : memref<1x8x4x32xf32, #tpu.memory_space<vmem>>, vector<1x8x1x32xf32>
    %42 = vector.shape_cast %41 : vector<1x8x1x32xf32> to vector<8x32xf32>
    %43 = vector.shape_cast %40 : vector<8x32xf32> to vector<1x8x1x32xf32>
    tpu.vector_store %arg6[%c0_35, %c0_36, %c1_37, %c0_38], %43 {strides = array<i32>} : memref<1x8x4x32xf32, #tpu.memory_space<vmem>>, vector<1x8x1x32xf32>,
    %c0_39 = arith.constant 0 : index
    %c0_40 = arith.constant 0 : index
    %c2 = arith.constant 2 : index
    %c0_41 = arith.constant 0 : index
    %44 = vector.load %arg3[%c0_39, %c0_40, %c2, %c0_41] : memref<1x8x4x32xf32, #tpu.memory_space<vmem>>, vector<1x8x1x32xf32>
    %45 = vector.shape_cast %44 : vector<1x8x1x32xf32> to vector<8x32xf32>
    %cst_42 = arith.constant 0.176776692 : f32
    %46 = vector.broadcast %cst_42 : f32 to vector<8x32xf32>
    %47 = arith.mulf %45, %46 : vector<8x32xf32>
    %c0_43 = arith.constant 0 : index
    %c0_44 = arith.constant 0 : index
    %c2_45 = arith.constant 2 : index
    %c0_46 = arith.constant 0 : index
    %48 = vector.load %arg4[%c0_43, %c0_44, %c2_45, %c0_46] : memref<1x8x4x32xf32, #tpu.memory_space<vmem>>, vector<1x8x1x32xf32>
    %49 = vector.shape_cast %48 : vector<1x8x1x32xf32> to vector<8x32xf32>
    %c0_47 = arith.constant 0 : index
    %c0_48 = arith.constant 0 : index
    %c2_49 = arith.constant 2 : index
    %c0_50 = arith.constant 0 : index
    %50 = vector.load %arg5[%c0_47, %c0_48, %c2_49, %c0_50] : memref<1x8x4x32xf32, #tpu.memory_space<vmem>>, vector<1x8x1x32xf32>
    %51 = vector.shape_cast %50 : vector<1x8x1x32xf32> to vector<8x32xf32>
    %cst_51 = arith.constant dense<0.000000e+00> : vector<8x8xf32>
    %52 = tpu.matmul %47, %49, %cst_51 {dimension_numbers = #tpu.dot_dimension_numbers<[1], [1], [0], [0], [0, 0, 1, 0], [], []>} : vector<8x32xf32>, vector<8x32xf32>, vector<8x8xf32> -> vector<8x8xf32>
    %cst_52 = arith.constant dense<0xFF800000> : vector<8xf32>
    %53 = vector.multi_reduction <maximumf>, %52, %cst_52 [1] : vector<8x8xf32> to vector<8xf32>
    %54 = vector.shape_cast %53 : vector<8xf32> to vector<8x1xf32>
    %55 = vector.broadcast %54 : vector<8x1xf32> to vector<8x8xf32>
    %56 = arith.subf %52, %55 : vector<8x8xf32>
    %57 = math.exp %56 : vector<8x8xf32>
    %cst_53 = arith.constant dense<0.000000e+00> : vector<8xf32>
    %58 = vector.multi_reduction <add>, %57, %cst_53 [1] : vector<8x8xf32> to vector<8xf32>
    %59 = vector.shape_cast %58 : vector<8xf32> to vector<8x1xf32>
    %cst_54 = arith.constant dense<0.000000e+00> : vector<8x32xf32>
    %60 = tpu.matmul %57, %51, %cst_54 {dimension_numbers = #tpu.dot_dimension_numbers<[1], [0], [0], [1], [0, 0, 1, 1], [], []>} : vector<8x8xf32>, vector<8x32xf32>, vector<8x32xf32> -> vector<8x32xf32>
    %61 = vector.broadcast %59 : vector<8x1xf32> to vector<8x32xf32>
    %62 = arith.divf %60, %61 : vector<8x32xf32>
    %c0_55 = arith.constant 0 : index
    %c0_56 = arith.constant 0 : index
    %c2_57 = arith.constant 2 : index
    %c0_58 = arith.constant 0 : index
    %63 = vector.load %arg6[%c0_55, %c0_56, %c2_57, %c0_58] : memref<1x8x4x32xf32, #tpu.memory_space<vmem>>, vector<1x8x1x32xf32>
    %64 = vector.shape_cast %63 : vector<1x8x1x32xf32> to vector<8x32xf32>
    %65 = vector.shape_cast %62 : vector<8x32xf32> to vector<1x8x1x32xf32>
    tpu.vector_store %arg6[%c0_55, %c0_56, %c2_57, %c0_58], %65 {strides = array<i32>} : memref<1x8x4x32xf32, #tpu.memory_space<vmem>>, vector<1x8x1x32xf32>,
    %c0_59 = arith.constant 0 : index
    %c0_60 = arith.constant 0 : index
    %c3 = arith.constant 3 : index
    %c0_61 = arith.constant 0 : index
    %66 = vector.load %arg3[%c0_59, %c0_60, %c3, %c0_61] : memref<1x8x4x32xf32, #tpu.memory_space<vmem>>, vector<1x8x1x32xf32>
    %67 = vector.shape_cast %66 : vector<1x8x1x32xf32> to vector<8x32xf32>
    %cst_62 = arith.constant 0.176776692 : f32
    %68 = vector.broadcast %cst_62 : f32 to vector<8x32xf32>
    %69 = arith.mulf %67, %68 : vector<8x32xf32>
    %c0_63 = arith.constant 0 : index
    %c0_64 = arith.constant 0 : index
    %c3_65 = arith.constant 3 : index
    %c0_66 = arith.constant 0 : index
    %70 = vector.load %arg4[%c0_63, %c0_64, %c3_65, %c0_66] : memref<1x8x4x32xf32, #tpu.memory_space<vmem>>, vector<1x8x1x32xf32>
    %71 = vector.shape_cast %70 : vector<1x8x1x32xf32> to vector<8x32xf32>
    %c0_67 = arith.constant 0 : index
    %c0_68 = arith.constant 0 : index
    %c3_69 = arith.constant 3 : index
    %c0_70 = arith.constant 0 : index
    %72 = vector.load %arg5[%c0_67, %c0_68, %c3_69, %c0_70] : memref<1x8x4x32xf32, #tpu.memory_space<vmem>>, vector<1x8x1x32xf32>
    %73 = vector.shape_cast %72 : vector<1x8x1x32xf32> to vector<8x32xf32>
    %cst_71 = arith.constant dense<0.000000e+00> : vector<8x8xf32>
    %74 = tpu.matmul %69, %71, %cst_71 {dimension_numbers = #tpu.dot_dimension_numbers<[1], [1], [0], [0], [0, 0, 1, 0], [], []>} : vector<8x32xf32>, vector<8x32xf32>, vector<8x8xf32> -> vector<8x8xf32>
    %cst_72 = arith.constant dense<0xFF800000> : vector<8xf32>
    %75 = vector.multi_reduction <maximumf>, %74, %cst_72 [1] : vector<8x8xf32> to vector<8xf32>
    %76 = vector.shape_cast %75 : vector<8xf32> to vector<8x1xf32>
    %77 = vector.broadcast %76 : vector<8x1xf32> to vector<8x8xf32>
    %78 = arith.subf %74, %77 : vector<8x8xf32>
    %79 = math.exp %78 : vector<8x8xf32>
    %cst_73 = arith.constant dense<0.000000e+00> : vector<8xf32>
    %80 = vector.multi_reduction <add>, %79, %cst_73 [1] : vector<8x8xf32> to vector<8xf32>
    %81 = vector.shape_cast %80 : vector<8xf32> to vector<8x1xf32>
    %cst_74 = arith.constant dense<0.000000e+00> : vector<8x32xf32>
    %82 = tpu.matmul %79, %73, %cst_74 {dimension_numbers = #tpu.dot_dimension_numbers<[1], [0], [0], [1], [0, 0, 1, 1], [], []>} : vector<8x8xf32>, vector<8x32xf32>, vector<8x32xf32> -> vector<8x32xf32>
    %83 = vector.broadcast %81 : vector<8x1xf32> to vector<8x32xf32>
    %84 = arith.divf %82, %83 : vector<8x32xf32>
    %c0_75 = arith.constant 0 : index
    %c0_76 = arith.constant 0 : index
    %c3_77 = arith.constant 3 : index
    %c0_78 = arith.constant 0 : index
    %85 = vector.load %arg6[%c0_75, %c0_76, %c3_77, %c0_78] : memref<1x8x4x32xf32, #tpu.memory_space<vmem>>, vector<1x8x1x32xf32>
    %86 = vector.shape_cast %85 : vector<1x8x1x32xf32> to vector<8x32xf32>
    %87 = vector.shape_cast %84 : vector<8x32xf32> to vector<1x8x1x32xf32>
    tpu.vector_store %arg6[%c0_75, %c0_76, %c3_77, %c0_78], %87 {strides = array<i32>} : memref<1x8x4x32xf32, #tpu.memory_space<vmem>>, vector<1x8x1x32xf32>,
    return
  }
  func.func @transform_0(%arg0: i32, %arg1: i32, %arg2: i32) -> (i32, i32, i32, i32) {
    %c0_i32 = arith.constant 0 : i32
    %c0_i32_0 = arith.constant 0 : i32
    %c0_i32_1 = arith.constant 0 : i32
    return %arg0, %arg1, %c0_i32, %c0_i32_0 : i32, i32, i32, i32
  }
  func.func @transform_1(%arg0: i32, %arg1: i32, %arg2: i32) -> (i32, i32, i32, i32) {
    %c0_i32 = arith.constant 0 : i32
    %c0_i32_0 = arith.constant 0 : i32
    %c0_i32_1 = arith.constant 0 : i32
    return %arg0, %arg2, %c0_i32, %c0_i32_0 : i32, i32, i32, i32
  }
  func.func @transform_2(%arg0: i32, %arg1: i32, %arg2: i32) -> (i32, i32, i32, i32) {
    %c0_i32 = arith.constant 0 : i32
    %c0_i32_0 = arith.constant 0 : i32
    %c0_i32_1 = arith.constant 0 : i32
    return %arg0, %arg2, %c0_i32, %c0_i32_0 : i32, i32, i32, i32
  }
  func.func @transform_3(%arg0: i32, %arg1: i32, %arg2: i32) -> (i32, i32, i32, i32) {
    %c0_i32 = arith.constant 0 : i32
    %c0_i32_0 = arith.constant 0 : i32
    %c0_i32_1 = arith.constant 0 : i32
    return %arg0, %arg1, %c0_i32, %c0_i32_0 : i32, i32, i32, i32
  }
}

</mosaic_0001>

<llo_original>
// kernel: tpu_custom_call.1
$region0: #{tpu_custom_call.1}
  #allocation0 [shape = 'u32[]', space=smem, size = 0x4, offset = 0x4, fixed_abs, tag = 'smem constant byte address 0x4 - core index']
  #allocation1 [shape = 'u32[144,128]{1,0:T(1,128)}', space=vmem, size = 0x12000, scoped, tag = 'internal scratch']
  %s0 = inlined_call_operand.hbm [shape: f32[2,8,4,32], index: 0, kind: input, shape index: {}]
  %s1 = inlined_call_operand.hbm [shape: f32[2,8,4,32], index: 1, kind: input, shape index: {}]
  %s2 = inlined_call_operand.hbm [shape: f32[2,8,4,32], index: 2, kind: input, shape index: {}]
  %s3 = inlined_call_operand.hbm [shape: f32[2,8,4,32], index: 3, kind: output, shape index: {}]
  %s4 = sld [smem:[#allocation0]]
  $region57: #{tpu_custom_call.1} parent=0
    _
  %s6 = ssub.s32 1, %s4
  %s7 = scalar_select 0, %s6, %s4
  $region1: #{tpu_custom_call.1} parent=0
    #allocation2 [shape = 'u8[32768]{0}', space=vmem, size = 0x8000, scoped, tag = 'input window, operand 0']
    #allocation3 [shape = 's32[2]{0}', space=sflag, size = 0x8, scoped, tag = 'scoped memory for tpu_custom_call.1']
    #allocation4 [shape = 's32[2]{0}', space=sflag, size = 0x8, scoped, tag = 'scoped memory for tpu_custom_call.1']
    #allocation5 [shape = 'u8[32768]{0}', space=vmem, size = 0x8000, scoped, tag = 'input window, operand 1']
    #allocation6 [shape = 's32[2]{0}', space=sflag, size = 0x8, scoped, tag = 'scoped memory for tpu_custom_call.1']
    #allocation7 [shape = 'u8[32768]{0}', space=vmem, size = 0x8000, scoped, tag = 'input window, operand 2']
    #allocation8 [shape = 'u8[32768]{0}', space=vmem, size = 0x8000, scoped, tag = 'output window, operand 0']
    %8 = vsyncpa [#allocation3], 0
    %s9 = scalar_lea.sflag [#allocation3], 1
    %10 = vsyncpa %s9, 0
    %11 = vsyncpa [#allocation6], 0
    %s12 = scalar_lea.sflag [#allocation6], 1
    %13 = vsyncpa %s12, 0
    %14 = vsyncpa [#allocation4], 0
    %s15 = scalar_lea.sflag [#allocation4], 1
    %16 = vsyncpa %s15, 0
    loop: start=0, step=1, limit=4
    $region2: #{tpu_custom_call.1} parent=1 // loop_pre_header
      _
    $region3: #{tpu_custom_call.1} parent=1 // loop_header
      %s18 = sphi 0, %s22
      %p19 = scmp.ge.s32.totalorder %s18, 4
      %s25 = sphi 0, %s44
      %s26 = sphi 0, %s40
      %s27 = sphi 0, %s36
      %s28 = sphi 0, %s25
      %s29 = sphi 0, %s26
      %s30 = sphi 0, %s27
      %s31 = sphi 0, %s28
      %s32 = sphi 0, %s29
      %s33 = sphi 0, %s30
      %s49 = sphi 0, %s51
      %s52 = sphi 0, %s49
      %s53 = sphi 0, %s52
      %s69 = sphi 0, %s53
      %s77 = sphi 0, %s79
      %s80 = sphi 0, %s77
      %s81 = sphi 0, %s80
      %s97 = sphi 0, %s81
      %s105 = sphi 0, %s107
      %s108 = sphi 0, %s105
      %s109 = sphi 0, %s108
      %s125 = sphi 0, %s109
      %s133 = sphi 0, %s135
      %s136 = sphi 0, %s133
      %s137 = sphi 0, %s136
      %s153 = sphi 0, %s137
    $region4: #{tpu_custom_call.1} parent=1 // loop_header_branch
      %21 = sbr.rel (%p19) target = $region8
    $region5: #{tpu_custom_call.1} parent=1 // loop_body
      %s23 = ssub.s32 %s18, 1
      %s24 = ssub.s32 %s18, 2
      %s34 = sadd.s32 1, %s27
      %p35 = scmp.ge.s32.totalorder %s34, 1
      %s36 = scalar_select %p35, 0, %s34
      %s37 = sadd.s32 1, %s26
      %s38 = scalar_select %p35, %s37, %s26
      %p39 = scmp.ge.s32.totalorder %s38, 1
      %s40 = scalar_select %p39, 0, %s38
      %s41 = sadd.s32 1, %s25
      %s42 = scalar_select %p39, %s41, %s25
      %p43 = scmp.ge.s32.totalorder %s42, 2
      %s44 = scalar_select %p43, 0, %s42
      %s45 = ssub.s32 %s25, %s44
      %s46 = ssub.s32 %s26, %s40
      %s47 = sor.u32 %s45, %s46
      %p48 = scmp.eq.s32.totalorder %s47, 0
      %s50 = sadd.s32 %s49, 1
      %s51 = scalar_select %p48, %s49, %s50
      %p54 = pneg %p48
      %p55 = scmp.eq.s32.totalorder %s18, 1
      %p56 = por %p54, %p55
      %p57 = scmp.ne.s32.totalorder %s49, %s52
      %p58 = scmp.eq.s32.totalorder %s18, 0
      %p59 = por %p57, %p58
      %p60 = scmp.ne.s32.totalorder %s49, %s52
      %p61 = scmp.eq.s32.totalorder %s23, 1
      %p62 = por %p60, %p61
      %p63 = scmp.ne.s32.totalorder %s52, %s53
      %p64 = scmp.eq.s32.totalorder %s23, 0
      %p65 = por %p63, %p64
      %p66 = scmp.ne.s32.totalorder %s52, %s53
      %p67 = scmp.eq.s32.totalorder %s24, 1
      %p68 = por %p66, %p67
      %p70 = scmp.ne.s32.totalorder %s53, %s69
      %p71 = scmp.eq.s32.totalorder %s24, 0
      %p72 = por %p70, %p71
      %s73 = ssub.s32 %s25, %s44
      %s74 = ssub.s32 %s27, %s36
      %s75 = sor.u32 %s73, %s74
      %p76 = scmp.eq.s32.totalorder %s75, 0
      %s78 = sadd.s32 %s77, 1
      %s79 = scalar_select %p76, %s77, %s78
      %p82 = pneg %p76
      %p83 = scmp.eq.s32.totalorder %s18, 1
      %p84 = por %p82, %p83
      %p85 = scmp.ne.s32.totalorder %s77, %s80
      %p86 = scmp.eq.s32.totalorder %s18, 0
      %p87 = por %p85, %p86
      %p88 = scmp.ne.s32.totalorder %s77, %s80
      %p89 = scmp.eq.s32.totalorder %s23, 1
      %p90 = por %p88, %p89
      %p91 = scmp.ne.s32.totalorder %s80, %s81
      %p92 = scmp.eq.s32.totalorder %s23, 0
      %p93 = por %p91, %p92
      %p94 = scmp.ne.s32.totalorder %s80, %s81
      %p95 = scmp.eq.s32.totalorder %s24, 1
      %p96 = por %p94, %p95
      %p98 = scmp.ne.s32.totalorder %s81, %s97
      %p99 = scmp.eq.s32.totalorder %s24, 0
      %p100 = por %p98, %p99
      %s101 = ssub.s32 %s25, %s44
      %s102 = ssub.s32 %s27, %s36
      %s103 = sor.u32 %s101, %s102
      %p104 = scmp.eq.s32.totalorder %s103, 0
      %s106 = sadd.s32 %s105, 1
      %s107 = scalar_select %p104, %s105, %s106
      %p110 = pneg %p104
      %p111 = scmp.eq.s32.totalorder %s18, 1
      %p112 = por %p110, %p111
      %p113 = scmp.ne.s32.totalorder %s105, %s108
      %p114 = scmp.eq.s32.totalorder %s18, 0
      %p115 = por %p113, %p114
      %p116 = scmp.ne.s32.totalorder %s105, %s108
      %p117 = scmp.eq.s32.totalorder %s23, 1
      %p118 = por %p116, %p117
      %p119 = scmp.ne.s32.totalorder %s108, %s109
      %p120 = scmp.eq.s32.totalorder %s23, 0
      %p121 = por %p119, %p120
      %p122 = scmp.ne.s32.totalorder %s108, %s109
      %p123 = scmp.eq.s32.totalorder %s24, 1
      %p124 = por %p122, %p123
      %p126 = scmp.ne.s32.totalorder %s109, %s125
      %p127 = scmp.eq.s32.totalorder %s24, 0
      %p128 = por %p126, %p127
      %s129 = ssub.s32 %s25, %s44
      %s130 = ssub.s32 %s26, %s40
      %s131 = sor.u32 %s129, %s130
      %p132 = scmp.eq.s32.totalorder %s131, 0
      %s134 = sadd.s32 %s133, 1
      %s135 = scalar_select %p132, %s133, %s134
      %p138 = pneg %p132
      %p139 = scmp.eq.s32.totalorder %s18, 1
      %p140 = por %p138, %p139
      %p141 = scmp.ne.s32.totalorder %s133, %s136
      %p142 = scmp.eq.s32.totalorder %s18, 0
      %p143 = por %p141, %p142
      %p144 = scmp.ne.s32.totalorder %s133, %s136
      %p145 = scmp.eq.s32.totalorder %s23, 1
      %p146 = por %p144, %p145
      %p147 = scmp.ne.s32.totalorder %s136, %s137
      %p148 = scmp.eq.s32.totalorder %s23, 0
      %p149 = por %p147, %p148
      %p150 = scmp.ne.s32.totalorder %s136, %s137
      %p151 = scmp.eq.s32.totalorder %s24, 1
      %p152 = por %p150, %p151
      %p154 = scmp.ne.s32.totalorder %s137, %s153
      %p155 = scmp.eq.s32.totalorder %s24, 0
      %p156 = por %p154, %p155
      %p157 = scmp.le.s32.totalorder 1, %s18
      %p158 = scmp.lt.s32.totalorder %s18, 3
      %p159 = pnand %p157, %p158
      %p160 = pneg %p159
      // Predicated region
      $region9: #{tpu_custom_call.1} parent=5 // pred_check
        _
      $region10: #{tpu_custom_call.1} parent=5 // pred_check_branch
        %162 = sbr.rel (%p159) target = $region12
      $region11: #{tpu_custom_call.1} parent=5 // pred_region
        %s163 = ssub.s32 %s18, 1
      $region12: #{tpu_custom_call.1} parent=5 // pred_fallthru
        _
      %p164 = scmp.lt.s32.totalorder %s18, 2
      // Predicated region
      $region13: #{tpu_custom_call.1} parent=5 // pred_check
        %p165 = pneg %p164
      $region14: #{tpu_custom_call.1} parent=5 // pred_check_branch
        %167 = sbr.rel (%p165) target = $region16
      $region15: #{tpu_custom_call.1} parent=5 // pred_region
        // Predicated region
        $region17: #{tpu_custom_call.1} parent=15 // pred_check
          %p168 = pneg %p59
        $region18: #{tpu_custom_call.1} parent=15 // pred_check_branch
          %170 = sbr.rel (%p168) target = $region20
        $region19: #{tpu_custom_call.1} parent=15 // pred_region
          %s171 = sand.u32 %s49, 1
          %s172 = scalar_lea.sflag [#allocation3], %s171
          %s173 = sand.u32 %s49, 1
          %s174 = smul.addr %s173, 32
          %s175 = scalar_lea.vmem [#allocation2], %s174
          %s176 = smul.u32 8, %s26
          %s178 = ssub.s32 512, 512
          %179 = vsyncadd %s172, %s178
          %s180 = smul.addr %s25, 8
          %s181 = sadd.s32 %s176, %s180
          %s182 = smul.addr %s181, 64
          %s183 = scalar_lea.hbm %s0, %s182
          %s184 = sshll.u32 %s175, 4
          %s185 = int_to_ptr.vmem [resolvable:$true] %s184
          %190 = dma.hbm_to_vmem [thread:$0]  %s183, 512, %s185, %s172, 64, 64, 4
        $region20: #{tpu_custom_call.1} parent=15 // pred_fallthru
          _
        // Predicated region
        $region21: #{tpu_custom_call.1} parent=15 // pred_check
          %p191 = pneg %p87
        $region22: #{tpu_custom_call.1} parent=15 // pred_check_branch
          %193 = sbr.rel (%p191) target = $region24
        $region23: #{tpu_custom_call.1} parent=15 // pred_region
          %s194 = sand.u32 %s18, 1
          %s195 = scalar_lea.sflag [#allocation6], %s194
          %s196 = sand.u32 %s77, 1
          %s197 = smul.addr %s196, 32
          %s198 = scalar_lea.vmem [#allocation5], %s197
          %s199 = smul.u32 8, %s27
          %s201 = ssub.s32 512, 512
          %202 = vsyncadd %s195, %s201
          %s203 = smul.addr %s25, 8
          %s204 = sadd.s32 %s199, %s203
          %s205 = smul.addr %s204, 64
          %s206 = scalar_lea.hbm %s1, %s205
          %s207 = sshll.u32 %s198, 4
          %s208 = int_to_ptr.vmem [resolvable:$true] %s207
          %213 = dma.hbm_to_vmem [thread:$0]  %s206, 512, %s208, %s195, 64, 64, 4
        $region24: #{tpu_custom_call.1} parent=15 // pred_fallthru
          _
        // Predicated region
        $region25: #{tpu_custom_call.1} parent=15 // pred_check
          %p214 = pneg %p115
        $region26: #{tpu_custom_call.1} parent=15 // pred_check_branch
          %216 = sbr.rel (%p214) target = $region28
        $region27: #{tpu_custom_call.1} parent=15 // pred_region
          %s217 = sand.u32 %s18, 1
          %s218 = scalar_lea.sflag [#allocation6], %s217
          %s219 = sand.u32 %s105, 1
          %s220 = smul.addr %s219, 32
          %s221 = scalar_lea.vmem [#allocation7], %s220
          %s222 = smul.u32 8, %s27
          %s224 = ssub.s32 512, 512
          %225 = vsyncadd %s218, %s224
          %s226 = smul.addr %s25, 8
          %s227 = sadd.s32 %s222, %s226
          %s228 = smul.addr %s227, 64
          %s229 = scalar_lea.hbm %s2, %s228
          %s230 = sshll.u32 %s221, 4
          %s231 = int_to_ptr.vmem [resolvable:$true] %s230
          %236 = dma.hbm_to_vmem [thread:$0]  %s229, 512, %s231, %s218, 64, 64, 4
        $region28: #{tpu_custom_call.1} parent=15 // pred_fallthru
          _
      $region16: #{tpu_custom_call.1} parent=5 // pred_fallthru
        _
      %p237 = scmp.le.s32.totalorder 1, %s18
      %p238 = scmp.lt.s32.totalorder %s18, 3
      %p239 = pnand %p237, %p238
      %p240 = pneg %p239
      // Predicated region
      $region29: #{tpu_custom_call.1} parent=5 // pred_check
        _
      $region30: #{tpu_custom_call.1} parent=5 // pred_check_branch
        %242 = sbr.rel (%p239) target = $region32
      $region31: #{tpu_custom_call.1} parent=5 // pred_region
        %s243 = ssub.s32 %s18, 1
        %s244 = sand.u32 %s52, 1
        %s245 = scalar_lea.sflag [#allocation3], %s244
        %s246 = sand.u32 %s52, 1
        %s247 = smul.addr %s246, 32
        %s248 = scalar_lea.vmem [#allocation2], %s247
        // Predicated region
        $region33: #{tpu_custom_call.1} parent=31 // pred_check
          %p249 = pneg %p65
        $region34: #{tpu_custom_call.1} parent=31 // pred_check_branch
          %251 = sbr.rel (%p249) target = $region36
        $region35: #{tpu_custom_call.1} parent=31 // pred_region
          %252 = dma.done %s245, 512
        $region36: #{tpu_custom_call.1} parent=31 // pred_fallthru
          _
        %s253 = sand.u32 %s23, 1
        %s254 = scalar_lea.sflag [#allocation6], %s253
        %s255 = sand.u32 %s80, 1
        %s256 = smul.addr %s255, 32
        %s257 = scalar_lea.vmem [#allocation5], %s256
        // Predicated region
        $region37: #{tpu_custom_call.1} parent=31 // pred_check
          %p258 = pneg %p93
        $region38: #{tpu_custom_call.1} parent=31 // pred_check_branch
          %260 = sbr.rel (%p258) target = $region40
        $region39: #{tpu_custom_call.1} parent=31 // pred_region
          %261 = dma.done %s254, 512
        $region40: #{tpu_custom_call.1} parent=31 // pred_fallthru
          _
        %s262 = sand.u32 %s23, 1
        %s263 = scalar_lea.sflag [#allocation6], %s262
        %s264 = sand.u32 %s108, 1
        %s265 = smul.addr %s264, 32
        %s266 = scalar_lea.vmem [#allocation7], %s265
        // Predicated region
        $region41: #{tpu_custom_call.1} parent=31 // pred_check
          %p267 = pneg %p121
        $region42: #{tpu_custom_call.1} parent=31 // pred_check_branch
          %269 = sbr.rel (%p267) target = $region44
        $region43: #{tpu_custom_call.1} parent=31 // pred_region
          %270 = dma.done %s263, 512
        $region44: #{tpu_custom_call.1} parent=31 // pred_fallthru
          _
        %s271 = sand.u32 %s52, 1
        %s272 = scalar_lea.sflag [#allocation3], %s271
        %s273 = sand.u32 %s52, 1
        %s274 = smul.addr %s273, 32
        %s275 = scalar_lea.vmem [#allocation2], %s274
        %p276 = pneg %p65
        %p277 = pneg %p62
        %s278 = sand.u32 %s23, 1
        %s279 = scalar_lea.sflag [#allocation6], %s278
        %s280 = sand.u32 %s80, 1
        %s281 = smul.addr %s280, 32
        %s282 = scalar_lea.vmem [#allocation5], %s281
        %p283 = pneg %p93
        %p284 = pneg %p90
        %s285 = sand.u32 %s23, 1
        %s286 = scalar_lea.sflag [#allocation6], %s285
        %s287 = sand.u32 %s108, 1
        %s288 = smul.addr %s287, 32
        %s289 = scalar_lea.vmem [#allocation7], %s288
        %p290 = pneg %p121
        %p291 = pneg %p118
        %p292 = pneg %p149
        %p293 = pneg %p146
        %s294 = sand.u32 %s136, 1
        %s295 = scalar_lea.sflag [#allocation4], %s294
        %s296 = sand.u32 %s136, 1
        %s297 = smul.addr %s296, 32
        %s298 = scalar_lea.vmem [#allocation8], %s297
        %s299 = smul.u32 8, %s29
        %s300 = smul.u32 8, %s30
        %s301 = smul.u32 8, %s30
        %s302 = smul.u32 8, %s29
        %v303 = vld [vmem:[%s248] sm:$0x1]
        %v304 = vld [vmem:[%s248 + $0x4] sm:$0x1]
        %v305 = vld [vmem:[%s248 + $0x8] sm:$0x1]
        %v306 = vld [vmem:[%s248 + $0xc] sm:$0x1]
        %v307 = vld [vmem:[%s248 + $0x10] sm:$0x1]
        %v308 = vld [vmem:[%s248 + $0x14] sm:$0x1]
        %v309 = vld [vmem:[%s248 + $0x18] sm:$0x1]
        %v310 = vld [vmem:[%s248 + $0x1c] sm:$0x1]
        %v311 = vmul.f32 %v303, 0.17677669
        %v312 = vmul.f32 %v304, 0.17677669
        %v313 = vmul.f32 %v305, 0.17677669
        %v314 = vmul.f32 %v306, 0.17677669
        %v315 = vmul.f32 %v307, 0.17677669
        %v316 = vmul.f32 %v308, 0.17677669
        %v317 = vmul.f32 %v309, 0.17677669
        %v318 = vmul.f32 %v310, 0.17677669
        %v319 = vld [vmem:[%s257] sm:$0x1]
        %v320 = vld [vmem:[%s257 + $0x4] sm:$0x1]
        %v321 = vld [vmem:[%s257 + $0x8] sm:$0x1]
        %v322 = vld [vmem:[%s257 + $0xc] sm:$0x1]
        %v323 = vld [vmem:[%s257 + $0x10] sm:$0x1]
        %v324 = vld [vmem:[%s257 + $0x14] sm:$0x1]
        %v325 = vld [vmem:[%s257 + $0x18] sm:$0x1]
        %v326 = vld [vmem:[%s257 + $0x1c] sm:$0x1]
        %v327 = vld [vmem:[%s266] sm:$0x1]
        %v328 = vld [vmem:[%s266 + $0x4] sm:$0x1]
        %v329 = vld [vmem:[%s266 + $0x8] sm:$0x1]
        %v330 = vld [vmem:[%s266 + $0xc] sm:$0x1]
        %v331 = vld [vmem:[%s266 + $0x10] sm:$0x1]
        %v332 = vld [vmem:[%s266 + $0x14] sm:$0x1]
        %v333 = vld [vmem:[%s266 + $0x18] sm:$0x1]
        %v334 = vld [vmem:[%s266 + $0x1c] sm:$0x1]
        %v343 = vrot.slane %v312, 7
        %vm344 = vcmask 1041409
        %v345 = vsel %vm344, %v343, %v311
        %v346 = vrot.slane %v313, 6
        %vm347 = vcmask 1042434
        %v348 = vsel %vm347, %v346, %v345
        %v349 = vrot.slane %v314, 5
        %vm350 = vcmask 1043459
        %v351 = vsel %vm350, %v349, %v348
        %v352 = vrot.slane %v315, 4
        %vm353 = vcmask 1044484
        %v354 = vsel %vm353, %v352, %v351
        %v355 = vrot.slane %v316, 3
        %vm356 = vcmask 1045509
        %v357 = vsel %vm356, %v355, %v354
        %v358 = vrot.slane %v317, 2
        %vm359 = vcmask 1046534
        %v360 = vsel %vm359, %v358, %v357
        %v361 = vrot.slane %v318, 1
        %vm362 = vcmask 1047559
        %v363 = vsel %vm362, %v361, %v360
        %v372 = vrot.slane %v320, 7
        %v373 = vsel %vm344, %v372, %v319
        %v374 = vrot.slane %v321, 6
        %v375 = vsel %vm347, %v374, %v373
        %v376 = vrot.slane %v322, 5
        %v377 = vsel %vm350, %v376, %v375
        %v378 = vrot.slane %v323, 4
        %v379 = vsel %vm353, %v378, %v377
        %v380 = vrot.slane %v324, 3
        %v381 = vsel %vm356, %v380, %v379
        %v382 = vrot.slane %v325, 2
        %v383 = vsel %vm359, %v382, %v381
        %v384 = vrot.slane %v326, 1
        %v385 = vsel %vm362, %v384, %v383
        %vm386 = vcmask 261120
        %v387 = vsel %vm386, %v363, 0
        %v389 = vsel %vm386, %v385, 0
        %391 = vmatprep.subr.mxu0 0.0
        %392 = vmatpush1.xpose.msra.mxu0 0.0
        %393 = vmatprep.subr.mxu0 0.0
        %394 = vmatpush1.xpose.msra.mxu0 0.0
        %395 = vmatprep.subr.mxu0 0.0
        %396 = vmatpush1.xpose.msra.mxu0 0.0
        %397 = vmatprep.subr.mxu0 0.0
        %398 = vmatpush1.xpose.msra.mxu0 0.0
        %399 = vmatprep.subr.mxu0 0.0
        %400 = vmatpush1.xpose.msra.mxu0 0.0
        %401 = vmatprep.subr.mxu0 0.0
        %402 = vmatpush1.xpose.msra.mxu0 0.0
        %403 = vmatprep.subr.mxu0 0.0
        %404 = vmatpush1.xpose.msra.mxu0 0.0
        %405 = vmatprep.subr.mxu0 0.0
        %406 = vmatpush1.xpose.msra.mxu0 0.0
        %407 = vmatprep.subr.mxu0 0.0
        %408 = vmatpush1.xpose.msra.mxu0 0.0
        %409 = vmatprep.subr.mxu0 0.0
        %410 = vmatpush1.xpose.msra.mxu0 0.0
        %411 = vmatprep.subr.mxu0 0.0
        %412 = vmatpush1.xpose.msra.mxu0 0.0
        %413 = vmatprep.subr.mxu0 0.0
        %414 = vmatpush1.xpose.msra.mxu0 0.0
        %415 = vmatprep.subr.mxu0 0.0
        %416 = vmatpush1.xpose.msra.mxu0 0.0
        %417 = vmatprep.subr.mxu0 0.0
        %418 = vmatpush1.xpose.msra.mxu0 0.0
        %419 = vmatprep.subr.mxu0 0.0
        %420 = vmatpush1.xpose.msra.mxu0 0.0
        %421 = vmatprep.subr.mxu0 0.0
        %422 = vmatpush1.xpose.msra.mxu0 %v389
        %423 = vmatprep.subr.mxu0 0.0
        %424 = vmatpush2.xpose.msra.mxu0 0.0
        %425 = vmatprep.subr.mxu0 0.0
        %426 = vmatpush2.xpose.msra.mxu0 0.0
        %427 = vmatprep.subr.mxu0 0.0
        %428 = vmatpush2.xpose.msra.mxu0 0.0
        %429 = vmatprep.subr.mxu0 0.0
        %430 = vmatpush2.xpose.msra.mxu0 0.0
        %431 = vmatprep.subr.mxu0 0.0
        %432 = vmatpush2.xpose.msra.mxu0 0.0
        %433 = vmatprep.subr.mxu0 0.0
        %434 = vmatpush2.xpose.msra.mxu0 0.0
        %435 = vmatprep.subr.mxu0 0.0
        %436 = vmatpush2.xpose.msra.mxu0 0.0
        %437 = vmatprep.subr.mxu0 0.0
        %438 = vmatpush2.xpose.msra.mxu0 0.0
        %439 = vmatprep.subr.mxu0 0.0
        %440 = vmatpush2.xpose.msra.mxu0 0.0
        %441 = vmatprep.subr.mxu0 0.0
        %442 = vmatpush2.xpose.msra.mxu0 0.0
        %443 = vmatprep.subr.mxu0 0.0
        %444 = vmatpush2.xpose.msra.mxu0 0.0
        %445 = vmatprep.subr.mxu0 0.0
        %446 = vmatpush2.xpose.msra.mxu0 0.0
        %447 = vmatprep.subr.mxu0 0.0
        %448 = vmatpush2.xpose.msra.mxu0 0.0
        %449 = vmatprep.subr.mxu0 0.0
        %450 = vmatpush2.xpose.msra.mxu0 0.0
        %451 = vmatprep.subr.mxu0 0.0
        %452 = vmatpush2.xpose.msra.mxu0 0.0
        %453 = vmatprep.subr.mxu0 0.0
        %454 = vmatpush2.xpose.msra.mxu0 0.0
        %455 = vmatprep.mubr.f32.mxu0 0.0
        %456 = vmatmul.mubr.f32.gmra.mxu0 %v387
        %v457 = vpop.f32.mrf.mxu0
        %v458 = vadd.f32 0.0, %v457
        %v459 = vpop.f32.mrf.mxu0
        %460 = vdwg.mxu0
        %vm461 = vcmask 64512
        %v462 = vsel %vm461, %v458, -inf
        %463 = vmax.xlane.f32.xlu0 %v462
        %v464 = vpop.xlane.xlu0 %463
        %v465 = vsub.f32 %v458, %v464
        %v466 = vmul.f32 %v465, 1.442695
        %v467 = vpow.pop %v466
        %v468 = vsel %vm461, %v467, 0.0
        %469 = vadd.xlane.f32.xlu0 %v468
        %v470 = vpop.xlane.xlu0 %469
        %v479 = vrot.slane %v328, 7
        %v480 = vsel %vm344, %v479, %v327
        %v481 = vrot.slane %v329, 6
        %v482 = vsel %vm347, %v481, %v480
        %v483 = vrot.slane %v330, 5
        %v484 = vsel %vm350, %v483, %v482
        %v485 = vrot.slane %v331, 4
        %v486 = vsel %vm353, %v485, %v484
        %v487 = vrot.slane %v332, 3
        %v488 = vsel %vm356, %v487, %v486
        %v489 = vrot.slane %v333, 2
        %v490 = vsel %vm359, %v489, %v488
        %v491 = vrot.slane %v334, 1
        %v492 = vsel %vm362, %v491, %v490
        %v495 = vsel %vm461, %v467, 0
        %497 = vmatprep.subr.mxu0 0.0
        %498 = vmatpush1.msra.mxu0 0.0
        %499 = vmatprep.subr.mxu0 0.0
        %500 = vmatpush1.msra.mxu0 0.0
        %501 = vmatprep.subr.mxu0 0.0
        %502 = vmatpush1.msra.mxu0 0.0
        %503 = vmatprep.subr.mxu0 0.0
        %504 = vmatpush1.msra.mxu0 0.0
        %505 = vmatprep.subr.mxu0 0.0
        %506 = vmatpush1.msra.mxu0 0.0
        %507 = vmatprep.subr.mxu0 0.0
        %508 = vmatpush1.msra.mxu0 0.0
        %509 = vmatprep.subr.mxu0 0.0
        %510 = vmatpush1.msra.mxu0 0.0
        %511 = vmatprep.subr.mxu0 0.0
        %512 = vmatpush1.msra.mxu0 0.0
        %513 = vmatprep.subr.mxu0 0.0
        %514 = vmatpush1.msra.mxu0 0.0
        %515 = vmatprep.subr.mxu0 0.0
        %516 = vmatpush1.msra.mxu0 0.0
        %517 = vmatprep.subr.mxu0 0.0
        %518 = vmatpush1.msra.mxu0 0.0
        %519 = vmatprep.subr.mxu0 0.0
        %520 = vmatpush1.msra.mxu0 0.0
        %521 = vmatprep.subr.mxu0 0.0
        %522 = vmatpush1.msra.mxu0 0.0
        %523 = vmatprep.subr.mxu0 0.0
        %524 = vmatpush1.msra.mxu0 0.0
        %525 = vmatprep.subr.mxu0 0.0
        %526 = vmatpush1.msra.mxu0 0.0
        %527 = vmatprep.subr.mxu0 0.0
        %528 = vmatpush1.msra.mxu0 %v492
        %529 = vmatprep.subr.mxu0 0.0
        %530 = vmatpush2.msra.mxu0 0.0
        %531 = vmatprep.subr.mxu0 0.0
        %532 = vmatpush2.msra.mxu0 0.0
        %533 = vmatprep.subr.mxu0 0.0
        %534 = vmatpush2.msra.mxu0 0.0
        %535 = vmatprep.subr.mxu0 0.0
        %536 = vmatpush2.msra.mxu0 0.0
        %537 = vmatprep.subr.mxu0 0.0
        %538 = vmatpush2.msra.mxu0 0.0
        %539 = vmatprep.subr.mxu0 0.0
        %540 = vmatpush2.msra.mxu0 0.0
        %541 = vmatprep.subr.mxu0 0.0
        %542 = vmatpush2.msra.mxu0 0.0
        %543 = vmatprep.subr.mxu0 0.0
        %544 = vmatpush2.msra.mxu0 0.0
        %545 = vmatprep.subr.mxu0 0.0
        %546 = vmatpush2.msra.mxu0 0.0
        %547 = vmatprep.subr.mxu0 0.0
        %548 = vmatpush2.msra.mxu0 0.0
        %549 = vmatprep.subr.mxu0 0.0
        %550 = vmatpush2.msra.mxu0 0.0
        %551 = vmatprep.subr.mxu0 0.0
        %552 = vmatpush2.msra.mxu0 0.0
        %553 = vmatprep.subr.mxu0 0.0
        %554 = vmatpush2.msra.mxu0 0.0
        %555 = vmatprep.subr.mxu0 0.0
        %556 = vmatpush2.msra.mxu0 0.0
        %557 = vmatprep.subr.mxu0 0.0
        %558 = vmatpush2.msra.mxu0 0.0
        %559 = vmatprep.subr.mxu0 0.0
        %560 = vmatpush2.msra.mxu0 0.0
        %561 = vmatprep.mubr.f32.mxu0 0.0
        %562 = vmatmul.mubr.f32.gmra.mxu0 %v495
        %v563 = vpop.f32.mrf.mxu0
        %v564 = vadd.f32 0.0, %v563
        %v565 = vpop.f32.mrf.mxu0
        %566 = vdwg.mxu0
        %v567 = vrcp.pop %v470
        %v568 = vmul.f32 %v564, %v567
        %v570 = vcombine.high %v568, %v568
        %v572 = vunpack.c.l.s4 1966171168
        %v573 = vunpack.c.0.s8 %v572
        %v574 = vlaneseq
        %v575 = vshrl.u32 %v574, 7
        %v576 = vsub.s32 %v573, %v575
        %v577 = vrot.slane %v568, %v576
        %v579 = vunpack.c.l.s4 1966171168
        %v580 = vunpack.c.0.s8 %v579
        %v581 = vlaneseq
        %v582 = vshrl.u32 %v581, 7
        %v583 = vsub.s32 %v580, %v582
        %v584 = vrot.slane %v570, %v583
        %v585 = vcombine.high %v577, %v577
        %v586 = vcombine.high %v584, %v584
        %v588 = vunpack.c.l.s4 1966171168
        %v589 = vunpack.c.0.s8 %v588
        %v590 = vlaneseq
        %v591 = vshrl.u32 %v590, 7
        %v592 = vsub.s32 %v589, %v591
        %v593 = vrot.slane %v577, %v592
        %v595 = vunpack.c.l.s4 1966171168
        %v596 = vunpack.c.0.s8 %v595
        %v597 = vlaneseq
        %v598 = vshrl.u32 %v597, 7
        %v599 = vsub.s32 %v596, %v598
        %v600 = vrot.slane %v584, %v599
        %v602 = vunpack.c.l.s4 1966171168
        %v603 = vunpack.c.0.s8 %v602
        %v604 = vlaneseq
        %v605 = vshrl.u32 %v604, 7
        %v606 = vsub.s32 %v603, %v605
        %v607 = vrot.slane %v585, %v606
        %v609 = vunpack.c.l.s4 1966171168
        %v610 = vunpack.c.0.s8 %v609
        %v611 = vlaneseq
        %v612 = vshrl.u32 %v611, 7
        %v613 = vsub.s32 %v610, %v612
        %v614 = vrot.slane %v586, %v613
        %v615 = vcombine.high %v593, %v593
        %v616 = vcombine.high %v600, %v600
        %v617 = vcombine.high %v607, %v607
        %v618 = vcombine.high %v614, %v614
        %vm627 = vcmask 253952
        %628 = vst.msk [vmem:[%s298] sm:$0x1] %vm627, %v593
        %629 = vst.msk [vmem:[%s298 + $0x4] sm:$0x1] %vm627, %v607
        %630 = vst.msk [vmem:[%s298 + $0x8] sm:$0x1] %vm627, %v615
        %631 = vst.msk [vmem:[%s298 + $0xc] sm:$0x1] %vm627, %v617
        %632 = vst.msk [vmem:[%s298 + $0x10] sm:$0x1] %vm627, %v600
        %633 = vst.msk [vmem:[%s298 + $0x14] sm:$0x1] %vm627, %v614
        %634 = vst.msk [vmem:[%s298 + $0x18] sm:$0x1] %vm627, %v616
        %635 = vst.msk [vmem:[%s298 + $0x1c] sm:$0x1] %vm627, %v618
        %v636 = vld [vmem:[%s248 + $0x1] sm:$0x1]
        %v637 = vld [vmem:[%s248 + $0x5] sm:$0x1]
        %v638 = vld [vmem:[%s248 + $0x9] sm:$0x1]
        %v639 = vld [vmem:[%s248 + $0xd] sm:$0x1]
        %v640 = vld [vmem:[%s248 + $0x11] sm:$0x1]
        %v641 = vld [vmem:[%s248 + $0x15] sm:$0x1]
        %v642 = vld [vmem:[%s248 + $0x19] sm:$0x1]
        %v643 = vld [vmem:[%s248 + $0x1d] sm:$0x1]
        %v644 = vmul.f32 %v636, 0.17677669
        %v645 = vmul.f32 %v637, 0.17677669
        %v646 = vmul.f32 %v638, 0.17677669
        %v647 = vmul.f32 %v639, 0.17677669
        %v648 = vmul.f32 %v640, 0.17677669
        %v649 = vmul.f32 %v641, 0.17677669
        %v650 = vmul.f32 %v642, 0.17677669
        %v651 = vmul.f32 %v643, 0.17677669
        %v652 = vld [vmem:[%s257 + $0x1] sm:$0x1]
        %v653 = vld [vmem:[%s257 + $0x5] sm:$0x1]
        %v654 = vld [vmem:[%s257 + $0x9] sm:$0x1]
        %v655 = vld [vmem:[%s257 + $0xd] sm:$0x1]
        %v656 = vld [vmem:[%s257 + $0x11] sm:$0x1]
        %v657 = vld [vmem:[%s257 + $0x15] sm:$0x1]
        %v658 = vld [vmem:[%s257 + $0x19] sm:$0x1]
        %v659 = vld [vmem:[%s257 + $0x1d] sm:$0x1]
        %v660 = vld [vmem:[%s266 + $0x1] sm:$0x1]
        %v661 = vld [vmem:[%s266 + $0x5] sm:$0x1]
        %v662 = vld [vmem:[%s266 + $0x9] sm:$0x1]
        %v663 = vld [vmem:[%s266 + $0xd] sm:$0x1]
        %v664 = vld [vmem:[%s266 + $0x11] sm:$0x1]
        %v665 = vld [vmem:[%s266 + $0x15] sm:$0x1]
        %v666 = vld [vmem:[%s266 + $0x19] sm:$0x1]
        %v667 = vld [vmem:[%s266 + $0x1d] sm:$0x1]
        %v676 = vrot.slane %v645, 7
        %v677 = vsel %vm344, %v676, %v644
        %v678 = vrot.slane %v646, 6
        %v679 = vsel %vm347, %v678, %v677
        %v680 = vrot.slane %v647, 5
        %v681 = vsel %vm350, %v680, %v679
        %v682 = vrot.slane %v648, 4
        %v683 = vsel %vm353, %v682, %v681
        %v684 = vrot.slane %v649, 3
        %v685 = vsel %vm356, %v684, %v683
        %v686 = vrot.slane %v650, 2
        %v687 = vsel %vm359, %v686, %v685
        %v688 = vrot.slane %v651, 1
        %v689 = vsel %vm362, %v688, %v687
        %v698 = vrot.slane %v653, 7
        %v699 = vsel %vm344, %v698, %v652
        %v700 = vrot.slane %v654, 6
        %v701 = vsel %vm347, %v700, %v699
        %v702 = vrot.slane %v655, 5
        %v703 = vsel %vm350, %v702, %v701
        %v704 = vrot.slane %v656, 4
        %v705 = vsel %vm353, %v704, %v703
        %v706 = vrot.slane %v657, 3
        %v707 = vsel %vm356, %v706, %v705
        %v708 = vrot.slane %v658, 2
        %v709 = vsel %vm359, %v708, %v707
        %v710 = vrot.slane %v659, 1
        %v711 = vsel %vm362, %v710, %v709
        %v712 = vsel %vm386, %v689, 0
        %v714 = vsel %vm386, %v711, 0
        %716 = vmatprep.subr.mxu0 0.0
        %717 = vmatpush1.xpose.msra.mxu0 0.0
        %718 = vmatprep.subr.mxu0 0.0
        %719 = vmatpush1.xpose.msra.mxu0 0.0
        %720 = vmatprep.subr.mxu0 0.0
        %721 = vmatpush1.xpose.msra.mxu0 0.0
        %722 = vmatprep.subr.mxu0 0.0
        %723 = vmatpush1.xpose.msra.mxu0 0.0
        %724 = vmatprep.subr.mxu0 0.0
        %725 = vmatpush1.xpose.msra.mxu0 0.0
        %726 = vmatprep.subr.mxu0 0.0
        %727 = vmatpush1.xpose.msra.mxu0 0.0
        %728 = vmatprep.subr.mxu0 0.0
        %729 = vmatpush1.xpose.msra.mxu0 0.0
        %730 = vmatprep.subr.mxu0 0.0
        %731 = vmatpush1.xpose.msra.mxu0 0.0
        %732 = vmatprep.subr.mxu0 0.0
        %733 = vmatpush1.xpose.msra.mxu0 0.0
        %734 = vmatprep.subr.mxu0 0.0
        %735 = vmatpush1.xpose.msra.mxu0 0.0
        %736 = vmatprep.subr.mxu0 0.0
        %737 = vmatpush1.xpose.msra.mxu0 0.0
        %738 = vmatprep.subr.mxu0 0.0
        %739 = vmatpush1.xpose.msra.mxu0 0.0
        %740 = vmatprep.subr.mxu0 0.0
        %741 = vmatpush1.xpose.msra.mxu0 0.0
        %742 = vmatprep.subr.mxu0 0.0
        %743 = vmatpush1.xpose.msra.mxu0 0.0
        %744 = vmatprep.subr.mxu0 0.0
        %745 = vmatpush1.xpose.msra.mxu0 0.0
        %746 = vmatprep.subr.mxu0 0.0
        %747 = vmatpush1.xpose.msra.mxu0 %v714
        %748 = vmatprep.subr.mxu0 0.0
        %749 = vmatpush2.xpose.msra.mxu0 0.0
        %750 = vmatprep.subr.mxu0 0.0
        %751 = vmatpush2.xpose.msra.mxu0 0.0
        %752 = vmatprep.subr.mxu0 0.0
        %753 = vmatpush2.xpose.msra.mxu0 0.0
        %754 = vmatprep.subr.mxu0 0.0
        %755 = vmatpush2.xpose.msra.mxu0 0.0
        %756 = vmatprep.subr.mxu0 0.0
        %757 = vmatpush2.xpose.msra.mxu0 0.0
        %758 = vmatprep.subr.mxu0 0.0
        %759 = vmatpush2.xpose.msra.mxu0 0.0
        %760 = vmatprep.subr.mxu0 0.0
        %761 = vmatpush2.xpose.msra.mxu0 0.0
        %762 = vmatprep.subr.mxu0 0.0
        %763 = vmatpush2.xpose.msra.mxu0 0.0
        %764 = vmatprep.subr.mxu0 0.0
        %765 = vmatpush2.xpose.msra.mxu0 0.0
        %766 = vmatprep.subr.mxu0 0.0
        %767 = vmatpush2.xpose.msra.mxu0 0.0
        %768 = vmatprep.subr.mxu0 0.0
        %769 = vmatpush2.xpose.msra.mxu0 0.0
        %770 = vmatprep.subr.mxu0 0.0
        %771 = vmatpush2.xpose.msra.mxu0 0.0
        %772 = vmatprep.subr.mxu0 0.0
        %773 = vmatpush2.xpose.msra.mxu0 0.0
        %774 = vmatprep.subr.mxu0 0.0
        %775 = vmatpush2.xpose.msra.mxu0 0.0
        %776 = vmatprep.subr.mxu0 0.0
        %777 = vmatpush2.xpose.msra.mxu0 0.0
        %778 = vmatprep.subr.mxu0 0.0
        %779 = vmatpush2.xpose.msra.mxu0 0.0
        %780 = vmatprep.mubr.f32.mxu0 0.0
        %781 = vmatmul.mubr.f32.gmra.mxu0 %v712
        %v782 = vpop.f32.mrf.mxu0
        %v783 = vadd.f32 0.0, %v782
        %v784 = vpop.f32.mrf.mxu0
        %785 = vdwg.mxu0
        %v786 = vsel %vm461, %v783, -inf
        %787 = vmax.xlane.f32.xlu0 %v786
        %v788 = vpop.xlane.xlu0 %787
        %v789 = vsub.f32 %v783, %v788
        %v790 = vmul.f32 %v789, 1.442695
        %v791 = vpow.pop %v790
        %v792 = vsel %vm461, %v791, 0.0
        %793 = vadd.xlane.f32.xlu0 %v792
        %v794 = vpop.xlane.xlu0 %793
        %v803 = vrot.slane %v661, 7
        %v804 = vsel %vm344, %v803, %v660
        %v805 = vrot.slane %v662, 6
        %v806 = vsel %vm347, %v805, %v804
        %v807 = vrot.slane %v663, 5
        %v808 = vsel %vm350, %v807, %v806
        %v809 = vrot.slane %v664, 4
        %v810 = vsel %vm353, %v809, %v808
        %v811 = vrot.slane %v665, 3
        %v812 = vsel %vm356, %v811, %v810
        %v813 = vrot.slane %v666, 2
        %v814 = vsel %vm359, %v813, %v812
        %v815 = vrot.slane %v667, 1
        %v816 = vsel %vm362, %v815, %v814
        %v819 = vsel %vm461, %v791, 0
        %821 = vmatprep.subr.mxu0 0.0
        %822 = vmatpush1.msra.mxu0 0.0
        %823 = vmatprep.subr.mxu0 0.0
        %824 = vmatpush1.msra.mxu0 0.0
        %825 = vmatprep.subr.mxu0 0.0
        %826 = vmatpush1.msra.mxu0 0.0
        %827 = vmatprep.subr.mxu0 0.0
        %828 = vmatpush1.msra.mxu0 0.0
        %829 = vmatprep.subr.mxu0 0.0
        %830 = vmatpush1.msra.mxu0 0.0
        %831 = vmatprep.subr.mxu0 0.0
        %832 = vmatpush1.msra.mxu0 0.0
        %833 = vmatprep.subr.mxu0 0.0
        %834 = vmatpush1.msra.mxu0 0.0
        %835 = vmatprep.subr.mxu0 0.0
        %836 = vmatpush1.msra.mxu0 0.0
        %837 = vmatprep.subr.mxu0 0.0
        %838 = vmatpush1.msra.mxu0 0.0
        %839 = vmatprep.subr.mxu0 0.0
        %840 = vmatpush1.msra.mxu0 0.0
        %841 = vmatprep.subr.mxu0 0.0
        %842 = vmatpush1.msra.mxu0 0.0
        %843 = vmatprep.subr.mxu0 0.0
        %844 = vmatpush1.msra.mxu0 0.0
        %845 = vmatprep.subr.mxu0 0.0
        %846 = vmatpush1.msra.mxu0 0.0
        %847 = vmatprep.subr.mxu0 0.0
        %848 = vmatpush1.msra.mxu0 0.0
        %849 = vmatprep.subr.mxu0 0.0
        %850 = vmatpush1.msra.mxu0 0.0
        %851 = vmatprep.subr.mxu0 0.0
        %852 = vmatpush1.msra.mxu0 %v816
        %853 = vmatprep.subr.mxu0 0.0
        %854 = vmatpush2.msra.mxu0 0.0
        %855 = vmatprep.subr.mxu0 0.0
        %856 = vmatpush2.msra.mxu0 0.0
        %857 = vmatprep.subr.mxu0 0.0
        %858 = vmatpush2.msra.mxu0 0.0
        %859 = vmatprep.subr.mxu0 0.0
        %860 = vmatpush2.msra.mxu0 0.0
        %861 = vmatprep.subr.mxu0 0.0
        %862 = vmatpush2.msra.mxu0 0.0
        %863 = vmatprep.subr.mxu0 0.0
        %864 = vmatpush2.msra.mxu0 0.0
        %865 = vmatprep.subr.mxu0 0.0
        %866 = vmatpush2.msra.mxu0 0.0
        %867 = vmatprep.subr.mxu0 0.0
        %868 = vmatpush2.msra.mxu0 0.0
        %869 = vmatprep.subr.mxu0 0.0
        %870 = vmatpush2.msra.mxu0 0.0
        %871 = vmatprep.subr.mxu0 0.0
        %872 = vmatpush2.msra.mxu0 0.0
        %873 = vmatprep.subr.mxu0 0.0
        %874 = vmatpush2.msra.mxu0 0.0
        %875 = vmatprep.subr.mxu0 0.0
        %876 = vmatpush2.msra.mxu0 0.0
        %877 = vmatprep.subr.mxu0 0.0
        %878 = vmatpush2.msra.mxu0 0.0
        %879 = vmatprep.subr.mxu0 0.0
        %880 = vmatpush2.msra.mxu0 0.0
        %881 = vmatprep.subr.mxu0 0.0
        %882 = vmatpush2.msra.mxu0 0.0
        %883 = vmatprep.subr.mxu0 0.0
        %884 = vmatpush2.msra.mxu0 0.0
        %885 = vmatprep.mubr.f32.mxu0 0.0
        %886 = vmatmul.mubr.f32.gmra.mxu0 %v819
        %v887 = vpop.f32.mrf.mxu0
        %v888 = vadd.f32 0.0, %v887
        %v889 = vpop.f32.mrf.mxu0
        %890 = vdwg.mxu0
        %v891 = vrcp.pop %v794
        %v892 = vmul.f32 %v888, %v891
        %v894 = vcombine.high %v892, %v892
        %v896 = vunpack.c.l.s4 1966171168
        %v897 = vunpack.c.0.s8 %v896
        %v898 = vlaneseq
        %v899 = vshrl.u32 %v898, 7
        %v900 = vsub.s32 %v897, %v899
        %v901 = vrot.slane %v892, %v900
        %v903 = vunpack.c.l.s4 1966171168
        %v904 = vunpack.c.0.s8 %v903
        %v905 = vlaneseq
        %v906 = vshrl.u32 %v905, 7
        %v907 = vsub.s32 %v904, %v906
        %v908 = vrot.slane %v894, %v907
        %v909 = vcombine.high %v901, %v901
        %v910 = vcombine.high %v908, %v908
        %v912 = vunpack.c.l.s4 1966171168
        %v913 = vunpack.c.0.s8 %v912
        %v914 = vlaneseq
        %v915 = vshrl.u32 %v914, 7
        %v916 = vsub.s32 %v913, %v915
        %v917 = vrot.slane %v901, %v916
        %v919 = vunpack.c.l.s4 1966171168
        %v920 = vunpack.c.0.s8 %v919
        %v921 = vlaneseq
        %v922 = vshrl.u32 %v921, 7
        %v923 = vsub.s32 %v920, %v922
        %v924 = vrot.slane %v908, %v923
        %v926 = vunpack.c.l.s4 1966171168
        %v927 = vunpack.c.0.s8 %v926
        %v928 = vlaneseq
        %v929 = vshrl.u32 %v928, 7
        %v930 = vsub.s32 %v927, %v929
        %v931 = vrot.slane %v909, %v930
        %v933 = vunpack.c.l.s4 1966171168
        %v934 = vunpack.c.0.s8 %v933
        %v935 = vlaneseq
        %v936 = vshrl.u32 %v935, 7
        %v937 = vsub.s32 %v934, %v936
        %v938 = vrot.slane %v910, %v937
        %v939 = vcombine.high %v917, %v917
        %v940 = vcombine.high %v924, %v924
        %v941 = vcombine.high %v931, %v931
        %v942 = vcombine.high %v938, %v938
        %951 = vst.msk [vmem:[%s298 + $0x1] sm:$0x1] %vm627, %v917
        %952 = vst.msk [vmem:[%s298 + $0x5] sm:$0x1] %vm627, %v931
        %953 = vst.msk [vmem:[%s298 + $0x9] sm:$0x1] %vm627, %v939
        %954 = vst.msk [vmem:[%s298 + $0xd] sm:$0x1] %vm627, %v941
        %955 = vst.msk [vmem:[%s298 + $0x11] sm:$0x1] %vm627, %v924
        %956 = vst.msk [vmem:[%s298 + $0x15] sm:$0x1] %vm627, %v938
        %957 = vst.msk [vmem:[%s298 + $0x19] sm:$0x1] %vm627, %v940
        %958 = vst.msk [vmem:[%s298 + $0x1d] sm:$0x1] %vm627, %v942
        %v959 = vld [vmem:[%s248 + $0x2] sm:$0x1]
        %v960 = vld [vmem:[%s248 + $0x6] sm:$0x1]
        %v961 = vld [vmem:[%s248 + $0xa] sm:$0x1]
        %v962 = vld [vmem:[%s248 + $0xe] sm:$0x1]
        %v963 = vld [vmem:[%s248 + $0x12] sm:$0x1]
        %v964 = vld [vmem:[%s248 + $0x16] sm:$0x1]
        %v965 = vld [vmem:[%s248 + $0x1a] sm:$0x1]
        %v966 = vld [vmem:[%s248 + $0x1e] sm:$0x1]
        %v967 = vmul.f32 %v959, 0.17677669
        %v968 = vmul.f32 %v960, 0.17677669
        %v969 = vmul.f32 %v961, 0.17677669
        %v970 = vmul.f32 %v962, 0.17677669
        %v971 = vmul.f32 %v963, 0.17677669
        %v972 = vmul.f32 %v964, 0.17677669
        %v973 = vmul.f32 %v965, 0.17677669
        %v974 = vmul.f32 %v966, 0.17677669
        %v975 = vld [vmem:[%s257 + $0x2] sm:$0x1]
        %v976 = vld [vmem:[%s257 + $0x6] sm:$0x1]
        %v977 = vld [vmem:[%s257 + $0xa] sm:$0x1]
        %v978 = vld [vmem:[%s257 + $0xe] sm:$0x1]
        %v979 = vld [vmem:[%s257 + $0x12] sm:$0x1]
        %v980 = vld [vmem:[%s257 + $0x16] sm:$0x1]
        %v981 = vld [vmem:[%s257 + $0x1a] sm:$0x1]
        %v982 = vld [vmem:[%s257 + $0x1e] sm:$0x1]
        %v983 = vld [vmem:[%s266 + $0x2] sm:$0x1]
        %v984 = vld [vmem:[%s266 + $0x6] sm:$0x1]
        %v985 = vld [vmem:[%s266 + $0xa] sm:$0x1]
        %v986 = vld [vmem:[%s266 + $0xe] sm:$0x1]
        %v987 = vld [vmem:[%s266 + $0x12] sm:$0x1]
        %v988 = vld [vmem:[%s266 + $0x16] sm:$0x1]
        %v989 = vld [vmem:[%s266 + $0x1a] sm:$0x1]
        %v990 = vld [vmem:[%s266 + $0x1e] sm:$0x1]
        %v999 = vrot.slane %v968, 7
        %v1000 = vsel %vm344, %v999, %v967
        %v1001 = vrot.slane %v969, 6
        %v1002 = vsel %vm347, %v1001, %v1000
        %v1003 = vrot.slane %v970, 5
        %v1004 = vsel %vm350, %v1003, %v1002
        %v1005 = vrot.slane %v971, 4
        %v1006 = vsel %vm353, %v1005, %v1004
        %v1007 = vrot.slane %v972, 3
        %v1008 = vsel %vm356, %v1007, %v1006
        %v1009 = vrot.slane %v973, 2
        %v1010 = vsel %vm359, %v1009, %v1008
        %v1011 = vrot.slane %v974, 1
        %v1012 = vsel %vm362, %v1011, %v1010
        %v1021 = vrot.slane %v976, 7
        %v1022 = vsel %vm344, %v1021, %v975
        %v1023 = vrot.slane %v977, 6
        %v1024 = vsel %vm347, %v1023, %v1022
        %v1025 = vrot.slane %v978, 5
        %v1026 = vsel %vm350, %v1025, %v1024
        %v1027 = vrot.slane %v979, 4
        %v1028 = vsel %vm353, %v1027, %v1026
        %v1029 = vrot.slane %v980, 3
        %v1030 = vsel %vm356, %v1029, %v1028
        %v1031 = vrot.slane %v981, 2
        %v1032 = vsel %vm359, %v1031, %v1030
        %v1033 = vrot.slane %v982, 1
        %v1034 = vsel %vm362, %v1033, %v1032
        %v1035 = vsel %vm386, %v1012, 0
        %v1037 = vsel %vm386, %v1034, 0
        %1039 = vmatprep.subr.mxu0 0.0
        %1040 = vmatpush1.xpose.msra.mxu0 0.0
        %1041 = vmatprep.subr.mxu0 0.0
        %1042 = vmatpush1.xpose.msra.mxu0 0.0
        %1043 = vmatprep.subr.mxu0 0.0
        %1044 = vmatpush1.xpose.msra.mxu0 0.0
        %1045 = vmatprep.subr.mxu0 0.0
        %1046 = vmatpush1.xpose.msra.mxu0 0.0
        %1047 = vmatprep.subr.mxu0 0.0
        %1048 = vmatpush1.xpose.msra.mxu0 0.0
        %1049 = vmatprep.subr.mxu0 0.0
        %1050 = vmatpush1.xpose.msra.mxu0 0.0
        %1051 = vmatprep.subr.mxu0 0.0
        %1052 = vmatpush1.xpose.msra.mxu0 0.0
        %1053 = vmatprep.subr.mxu0 0.0
        %1054 = vmatpush1.xpose.msra.mxu0 0.0
        %1055 = vmatprep.subr.mxu0 0.0
        %1056 = vmatpush1.xpose.msra.mxu0 0.0
        %1057 = vmatprep.subr.mxu0 0.0
        %1058 = vmatpush1.xpose.msra.mxu0 0.0
        %1059 = vmatprep.subr.mxu0 0.0
        %1060 = vmatpush1.xpose.msra.mxu0 0.0
        %1061 = vmatprep.subr.mxu0 0.0
        %1062 = vmatpush1.xpose.msra.mxu0 0.0
        %1063 = vmatprep.subr.mxu0 0.0
        %1064 = vmatpush1.xpose.msra.mxu0 0.0
        %1065 = vmatprep.subr.mxu0 0.0
        %1066 = vmatpush1.xpose.msra.mxu0 0.0
        %1067 = vmatprep.subr.mxu0 0.0
        %1068 = vmatpush1.xpose.msra.mxu0 0.0
        %1069 = vmatprep.subr.mxu0 0.0
        %1070 = vmatpush1.xpose.msra.mxu0 %v1037
        %1071 = vmatprep.subr.mxu0 0.0
        %1072 = vmatpush2.xpose.msra.mxu0 0.0
        %1073 = vmatprep.subr.mxu0 0.0
        %1074 = vmatpush2.xpose.msra.mxu0 0.0
        %1075 = vmatprep.subr.mxu0 0.0
        %1076 = vmatpush2.xpose.msra.mxu0 0.0
        %1077 = vmatprep.subr.mxu0 0.0
        %1078 = vmatpush2.xpose.msra.mxu0 0.0
        %1079 = vmatprep.subr.mxu0 0.0
        %1080 = vmatpush2.xpose.msra.mxu0 0.0
        %1081 = vmatprep.subr.mxu0 0.0
        %1082 = vmatpush2.xpose.msra.mxu0 0.0
        %1083 = vmatprep.subr.mxu0 0.0
        %1084 = vmatpush2.xpose.msra.mxu0 0.0
        %1085 = vmatprep.subr.mxu0 0.0
        %1086 = vmatpush2.xpose.msra.mxu0 0.0
        %1087 = vmatprep.subr.mxu0 0.0
        %1088 = vmatpush2.xpose.msra.mxu0 0.0
        %1089 = vmatprep.subr.mxu0 0.0
        %1090 = vmatpush2.xpose.msra.mxu0 0.0
        %1091 = vmatprep.subr.mxu0 0.0
        %1092 = vmatpush2.xpose.msra.mxu0 0.0
        %1093 = vmatprep.subr.mxu0 0.0
        %1094 = vmatpush2.xpose.msra.mxu0 0.0
        %1095 = vmatprep.subr.mxu0 0.0
        %1096 = vmatpush2.xpose.msra.mxu0 0.0
        %1097 = vmatprep.subr.mxu0 0.0
        %1098 = vmatpush2.xpose.msra.mxu0 0.0
        %1099 = vmatprep.subr.mxu0 0.0
        %1100 = vmatpush2.xpose.msra.mxu0 0.0
        %1101 = vmatprep.subr.mxu0 0.0
        %1102 = vmatpush2.xpose.msra.mxu0 0.0
        %1103 = vmatprep.mubr.f32.mxu0 0.0
        %1104 = vmatmul.mubr.f32.gmra.mxu0 %v1035
        %v1105 = vpop.f32.mrf.mxu0
        %v1106 = vadd.f32 0.0, %v1105
        %v1107 = vpop.f32.mrf.mxu0
        %1108 = vdwg.mxu0
        %v1109 = vsel %vm461, %v1106, -inf
        %1110 = vmax.xlane.f32.xlu0 %v1109
        %v1111 = vpop.xlane.xlu0 %1110
        %v1112 = vsub.f32 %v1106, %v1111
        %v1113 = vmul.f32 %v1112, 1.442695
        %v1114 = vpow.pop %v1113
        %v1115 = vsel %vm461, %v1114, 0.0
        %1116 = vadd.xlane.f32.xlu0 %v1115
        %v1117 = vpop.xlane.xlu0 %1116
        %v1126 = vrot.slane %v984, 7
        %v1127 = vsel %vm344, %v1126, %v983
        %v1128 = vrot.slane %v985, 6
        %v1129 = vsel %vm347, %v1128, %v1127
        %v1130 = vrot.slane %v986, 5
        %v1131 = vsel %vm350, %v1130, %v1129
        %v1132 = vrot.slane %v987, 4
        %v1133 = vsel %vm353, %v1132, %v1131
        %v1134 = vrot.slane %v988, 3
        %v1135 = vsel %vm356, %v1134, %v1133
        %v1136 = vrot.slane %v989, 2
        %v1137 = vsel %vm359, %v1136, %v1135
        %v1138 = vrot.slane %v990, 1
        %v1139 = vsel %vm362, %v1138, %v1137
        %v1142 = vsel %vm461, %v1114, 0
        %1144 = vmatprep.subr.mxu0 0.0
        %1145 = vmatpush1.msra.mxu0 0.0
        %1146 = vmatprep.subr.mxu0 0.0
        %1147 = vmatpush1.msra.mxu0 0.0
        %1148 = vmatprep.subr.mxu0 0.0
        %1149 = vmatpush1.msra.mxu0 0.0
        %1150 = vmatprep.subr.mxu0 0.0
        %1151 = vmatpush1.msra.mxu0 0.0
        %1152 = vmatprep.subr.mxu0 0.0
        %1153 = vmatpush1.msra.mxu0 0.0
        %1154 = vmatprep.subr.mxu0 0.0
        %1155 = vmatpush1.msra.mxu0 0.0
        %1156 = vmatprep.subr.mxu0 0.0
        %1157 = vmatpush1.msra.mxu0 0.0
        %1158 = vmatprep.subr.mxu0 0.0
        %1159 = vmatpush1.msra.mxu0 0.0
        %1160 = vmatprep.subr.mxu0 0.0
        %1161 = vmatpush1.msra.mxu0 0.0
        %1162 = vmatprep.subr.mxu0 0.0
        %1163 = vmatpush1.msra.mxu0 0.0
        %1164 = vmatprep.subr.mxu0 0.0
        %1165 = vmatpush1.msra.mxu0 0.0
        %1166 = vmatprep.subr.mxu0 0.0
        %1167 = vmatpush1.msra.mxu0 0.0
        %1168 = vmatprep.subr.mxu0 0.0
        %1169 = vmatpush1.msra.mxu0 0.0
        %1170 = vmatprep.subr.mxu0 0.0
        %1171 = vmatpush1.msra.mxu0 0.0
        %1172 = vmatprep.subr.mxu0 0.0
        %1173 = vmatpush1.msra.mxu0 0.0
        %1174 = vmatprep.subr.mxu0 0.0
        %1175 = vmatpush1.msra.mxu0 %v1139
        %1176 = vmatprep.subr.mxu0 0.0
        %1177 = vmatpush2.msra.mxu0 0.0
        %1178 = vmatprep.subr.mxu0 0.0
        %1179 = vmatpush2.msra.mxu0 0.0
        %1180 = vmatprep.subr.mxu0 0.0
        %1181 = vmatpush2.msra.mxu0 0.0
        %1182 = vmatprep.subr.mxu0 0.0
        %1183 = vmatpush2.msra.mxu0 0.0
        %1184 = vmatprep.subr.mxu0 0.0
        %1185 = vmatpush2.msra.mxu0 0.0
        %1186 = vmatprep.subr.mxu0 0.0
        %1187 = vmatpush2.msra.mxu0 0.0
        %1188 = vmatprep.subr.mxu0 0.0
        %1189 = vmatpush2.msra.mxu0 0.0
        %1190 = vmatprep.subr.mxu0 0.0
        %1191 = vmatpush2.msra.mxu0 0.0
        %1192 = vmatprep.subr.mxu0 0.0
        %1193 = vmatpush2.msra.mxu0 0.0
        %1194 = vmatprep.subr.mxu0 0.0
        %1195 = vmatpush2.msra.mxu0 0.0
        %1196 = vmatprep.subr.mxu0 0.0
        %1197 = vmatpush2.msra.mxu0 0.0
        %1198 = vmatprep.subr.mxu0 0.0
        %1199 = vmatpush2.msra.mxu0 0.0
        %1200 = vmatprep.subr.mxu0 0.0
        %1201 = vmatpush2.msra.mxu0 0.0
        %1202 = vmatprep.subr.mxu0 0.0
        %1203 = vmatpush2.msra.mxu0 0.0
        %1204 = vmatprep.subr.mxu0 0.0
        %1205 = vmatpush2.msra.mxu0 0.0
        %1206 = vmatprep.subr.mxu0 0.0
        %1207 = vmatpush2.msra.mxu0 0.0
        %1208 = vmatprep.mubr.f32.mxu0 0.0
        %1209 = vmatmul.mubr.f32.gmra.mxu0 %v1142
        %v1210 = vpop.f32.mrf.mxu0
        %v1211 = vadd.f32 0.0, %v1210
        %v1212 = vpop.f32.mrf.mxu0
        %1213 = vdwg.mxu0
        %v1214 = vrcp.pop %v1117
        %v1215 = vmul.f32 %v1211, %v1214
        %v1217 = vcombine.high %v1215, %v1215
        %v1219 = vunpack.c.l.s4 1966171168
        %v1220 = vunpack.c.0.s8 %v1219
        %v1221 = vlaneseq
        %v1222 = vshrl.u32 %v1221, 7
        %v1223 = vsub.s32 %v1220, %v1222
        %v1224 = vrot.slane %v1215, %v1223
        %v1226 = vunpack.c.l.s4 1966171168
        %v1227 = vunpack.c.0.s8 %v1226
        %v1228 = vlaneseq
        %v1229 = vshrl.u32 %v1228, 7
        %v1230 = vsub.s32 %v1227, %v1229
        %v1231 = vrot.slane %v1217, %v1230
        %v1232 = vcombine.high %v1224, %v1224
        %v1233 = vcombine.high %v1231, %v1231
        %v1235 = vunpack.c.l.s4 1966171168
        %v1236 = vunpack.c.0.s8 %v1235
        %v1237 = vlaneseq
        %v1238 = vshrl.u32 %v1237, 7
        %v1239 = vsub.s32 %v1236, %v1238
        %v1240 = vrot.slane %v1224, %v1239
        %v1242 = vunpack.c.l.s4 1966171168
        %v1243 = vunpack.c.0.s8 %v1242
        %v1244 = vlaneseq
        %v1245 = vshrl.u32 %v1244, 7
        %v1246 = vsub.s32 %v1243, %v1245
        %v1247 = vrot.slane %v1231, %v1246
        %v1249 = vunpack.c.l.s4 1966171168
        %v1250 = vunpack.c.0.s8 %v1249
        %v1251 = vlaneseq
        %v1252 = vshrl.u32 %v1251, 7
        %v1253 = vsub.s32 %v1250, %v1252
        %v1254 = vrot.slane %v1232, %v1253
        %v1256 = vunpack.c.l.s4 1966171168
        %v1257 = vunpack.c.0.s8 %v1256
        %v1258 = vlaneseq
        %v1259 = vshrl.u32 %v1258, 7
        %v1260 = vsub.s32 %v1257, %v1259
        %v1261 = vrot.slane %v1233, %v1260
        %v1262 = vcombine.high %v1240, %v1240
        %v1263 = vcombine.high %v1247, %v1247
        %v1264 = vcombine.high %v1254, %v1254
        %v1265 = vcombine.high %v1261, %v1261
        %1274 = vst.msk [vmem:[%s298 + $0x2] sm:$0x1] %vm627, %v1240
        %1275 = vst.msk [vmem:[%s298 + $0x6] sm:$0x1] %vm627, %v1254
        %1276 = vst.msk [vmem:[%s298 + $0xa] sm:$0x1] %vm627, %v1262
        %1277 = vst.msk [vmem:[%s298 + $0xe] sm:$0x1] %vm627, %v1264
        %1278 = vst.msk [vmem:[%s298 + $0x12] sm:$0x1] %vm627, %v1247
        %1279 = vst.msk [vmem:[%s298 + $0x16] sm:$0x1] %vm627, %v1261
        %1280 = vst.msk [vmem:[%s298 + $0x1a] sm:$0x1] %vm627, %v1263
        %1281 = vst.msk [vmem:[%s298 + $0x1e] sm:$0x1] %vm627, %v1265
        %v1282 = vld [vmem:[%s248 + $0x3] sm:$0x1]
        %v1283 = vld [vmem:[%s248 + $0x7] sm:$0x1]
        %v1284 = vld [vmem:[%s248 + $0xb] sm:$0x1]
        %v1285 = vld [vmem:[%s248 + $0xf] sm:$0x1]
        %v1286 = vld [vmem:[%s248 + $0x13] sm:$0x1]
        %v1287 = vld [vmem:[%s248 + $0x17] sm:$0x1]
        %v1288 = vld [vmem:[%s248 + $0x1b] sm:$0x1]
        %v1289 = vld [vmem:[%s248 + $0x1f] sm:$0x1]
        %v1290 = vmul.f32 %v1282, 0.17677669
        %v1291 = vmul.f32 %v1283, 0.17677669
        %v1292 = vmul.f32 %v1284, 0.17677669
        %v1293 = vmul.f32 %v1285, 0.17677669
        %v1294 = vmul.f32 %v1286, 0.17677669
        %v1295 = vmul.f32 %v1287, 0.17677669
        %v1296 = vmul.f32 %v1288, 0.17677669
        %v1297 = vmul.f32 %v1289, 0.17677669
        %v1298 = vld [vmem:[%s257 + $0x3] sm:$0x1]
        %v1299 = vld [vmem:[%s257 + $0x7] sm:$0x1]
        %v1300 = vld [vmem:[%s257 + $0xb] sm:$0x1]
        %v1301 = vld [vmem:[%s257 + $0xf] sm:$0x1]
        %v1302 = vld [vmem:[%s257 + $0x13] sm:$0x1]
        %v1303 = vld [vmem:[%s257 + $0x17] sm:$0x1]
        %v1304 = vld [vmem:[%s257 + $0x1b] sm:$0x1]
        %v1305 = vld [vmem:[%s257 + $0x1f] sm:$0x1]
        %v1306 = vld [vmem:[%s266 + $0x3] sm:$0x1]
        %v1307 = vld [vmem:[%s266 + $0x7] sm:$0x1]
        %v1308 = vld [vmem:[%s266 + $0xb] sm:$0x1]
        %v1309 = vld [vmem:[%s266 + $0xf] sm:$0x1]
        %v1310 = vld [vmem:[%s266 + $0x13] sm:$0x1]
        %v1311 = vld [vmem:[%s266 + $0x17] sm:$0x1]
        %v1312 = vld [vmem:[%s266 + $0x1b] sm:$0x1]
        %v1313 = vld [vmem:[%s266 + $0x1f] sm:$0x1]
        %v1322 = vrot.slane %v1291, 7
        %v1323 = vsel %vm344, %v1322, %v1290
        %v1324 = vrot.slane %v1292, 6
        %v1325 = vsel %vm347, %v1324, %v1323
        %v1326 = vrot.slane %v1293, 5
        %v1327 = vsel %vm350, %v1326, %v1325
        %v1328 = vrot.slane %v1294, 4
        %v1329 = vsel %vm353, %v1328, %v1327
        %v1330 = vrot.slane %v1295, 3
        %v1331 = vsel %vm356, %v1330, %v1329
        %v1332 = vrot.slane %v1296, 2
        %v1333 = vsel %vm359, %v1332, %v1331
        %v1334 = vrot.slane %v1297, 1
        %v1335 = vsel %vm362, %v1334, %v1333
        %v1344 = vrot.slane %v1299, 7
        %v1345 = vsel %vm344, %v1344, %v1298
        %v1346 = vrot.slane %v1300, 6
        %v1347 = vsel %vm347, %v1346, %v1345
        %v1348 = vrot.slane %v1301, 5
        %v1349 = vsel %vm350, %v1348, %v1347
        %v1350 = vrot.slane %v1302, 4
        %v1351 = vsel %vm353, %v1350, %v1349
        %v1352 = vrot.slane %v1303, 3
        %v1353 = vsel %vm356, %v1352, %v1351
        %v1354 = vrot.slane %v1304, 2
        %v1355 = vsel %vm359, %v1354, %v1353
        %v1356 = vrot.slane %v1305, 1
        %v1357 = vsel %vm362, %v1356, %v1355
        %v1358 = vsel %vm386, %v1335, 0
        %v1360 = vsel %vm386, %v1357, 0
        %1362 = vmatprep.subr.mxu0 0.0
        %1363 = vmatpush1.xpose.msra.mxu0 0.0
        %1364 = vmatprep.subr.mxu0 0.0
        %1365 = vmatpush1.xpose.msra.mxu0 0.0
        %1366 = vmatprep.subr.mxu0 0.0
        %1367 = vmatpush1.xpose.msra.mxu0 0.0
        %1368 = vmatprep.subr.mxu0 0.0
        %1369 = vmatpush1.xpose.msra.mxu0 0.0
        %1370 = vmatprep.subr.mxu0 0.0
        %1371 = vmatpush1.xpose.msra.mxu0 0.0
        %1372 = vmatprep.subr.mxu0 0.0
        %1373 = vmatpush1.xpose.msra.mxu0 0.0
        %1374 = vmatprep.subr.mxu0 0.0
        %1375 = vmatpush1.xpose.msra.mxu0 0.0
        %1376 = vmatprep.subr.mxu0 0.0
        %1377 = vmatpush1.xpose.msra.mxu0 0.0
        %1378 = vmatprep.subr.mxu0 0.0
        %1379 = vmatpush1.xpose.msra.mxu0 0.0
        %1380 = vmatprep.subr.mxu0 0.0
        %1381 = vmatpush1.xpose.msra.mxu0 0.0
        %1382 = vmatprep.subr.mxu0 0.0
        %1383 = vmatpush1.xpose.msra.mxu0 0.0
        %1384 = vmatprep.subr.mxu0 0.0
        %1385 = vmatpush1.xpose.msra.mxu0 0.0
        %1386 = vmatprep.subr.mxu0 0.0
        %1387 = vmatpush1.xpose.msra.mxu0 0.0
        %1388 = vmatprep.subr.mxu0 0.0
        %1389 = vmatpush1.xpose.msra.mxu0 0.0
        %1390 = vmatprep.subr.mxu0 0.0
        %1391 = vmatpush1.xpose.msra.mxu0 0.0
        %1392 = vmatprep.subr.mxu0 0.0
        %1393 = vmatpush1.xpose.msra.mxu0 %v1360
        %1394 = vmatprep.subr.mxu0 0.0
        %1395 = vmatpush2.xpose.msra.mxu0 0.0
        %1396 = vmatprep.subr.mxu0 0.0
        %1397 = vmatpush2.xpose.msra.mxu0 0.0
        %1398 = vmatprep.subr.mxu0 0.0
        %1399 = vmatpush2.xpose.msra.mxu0 0.0
        %1400 = vmatprep.subr.mxu0 0.0
        %1401 = vmatpush2.xpose.msra.mxu0 0.0
        %1402 = vmatprep.subr.mxu0 0.0
        %1403 = vmatpush2.xpose.msra.mxu0 0.0
        %1404 = vmatprep.subr.mxu0 0.0
        %1405 = vmatpush2.xpose.msra.mxu0 0.0
        %1406 = vmatprep.subr.mxu0 0.0
        %1407 = vmatpush2.xpose.msra.mxu0 0.0
        %1408 = vmatprep.subr.mxu0 0.0
        %1409 = vmatpush2.xpose.msra.mxu0 0.0
        %1410 = vmatprep.subr.mxu0 0.0
        %1411 = vmatpush2.xpose.msra.mxu0 0.0
        %1412 = vmatprep.subr.mxu0 0.0
        %1413 = vmatpush2.xpose.msra.mxu0 0.0
        %1414 = vmatprep.subr.mxu0 0.0
        %1415 = vmatpush2.xpose.msra.mxu0 0.0
        %1416 = vmatprep.subr.mxu0 0.0
        %1417 = vmatpush2.xpose.msra.mxu0 0.0
        %1418 = vmatprep.subr.mxu0 0.0
        %1419 = vmatpush2.xpose.msra.mxu0 0.0
        %1420 = vmatprep.subr.mxu0 0.0
        %1421 = vmatpush2.xpose.msra.mxu0 0.0
        %1422 = vmatprep.subr.mxu0 0.0
        %1423 = vmatpush2.xpose.msra.mxu0 0.0
        %1424 = vmatprep.subr.mxu0 0.0
        %1425 = vmatpush2.xpose.msra.mxu0 0.0
        %1426 = vmatprep.mubr.f32.mxu0 0.0
        %1427 = vmatmul.mubr.f32.gmra.mxu0 %v1358
        %v1428 = vpop.f32.mrf.mxu0
        %v1429 = vadd.f32 0.0, %v1428
        %v1430 = vpop.f32.mrf.mxu0
        %1431 = vdwg.mxu0
        %v1432 = vsel %vm461, %v1429, -inf
        %1433 = vmax.xlane.f32.xlu0 %v1432
        %v1434 = vpop.xlane.xlu0 %1433
        %v1435 = vsub.f32 %v1429, %v1434
        %v1436 = vmul.f32 %v1435, 1.442695
        %v1437 = vpow.pop %v1436
        %v1438 = vsel %vm461, %v1437, 0.0
        %1439 = vadd.xlane.f32.xlu0 %v1438
        %v1440 = vpop.xlane.xlu0 %1439
        %v1449 = vrot.slane %v1307, 7
        %v1450 = vsel %vm344, %v1449, %v1306
        %v1451 = vrot.slane %v1308, 6
        %v1452 = vsel %vm347, %v1451, %v1450
        %v1453 = vrot.slane %v1309, 5
        %v1454 = vsel %vm350, %v1453, %v1452
        %v1455 = vrot.slane %v1310, 4
        %v1456 = vsel %vm353, %v1455, %v1454
        %v1457 = vrot.slane %v1311, 3
        %v1458 = vsel %vm356, %v1457, %v1456
        %v1459 = vrot.slane %v1312, 2
        %v1460 = vsel %vm359, %v1459, %v1458
        %v1461 = vrot.slane %v1313, 1
        %v1462 = vsel %vm362, %v1461, %v1460
        %v1465 = vsel %vm461, %v1437, 0
        %1467 = vmatprep.subr.mxu0 0.0
        %1468 = vmatpush1.msra.mxu0 0.0
        %1469 = vmatprep.subr.mxu0 0.0
        %1470 = vmatpush1.msra.mxu0 0.0
        %1471 = vmatprep.subr.mxu0 0.0
        %1472 = vmatpush1.msra.mxu0 0.0
        %1473 = vmatprep.subr.mxu0 0.0
        %1474 = vmatpush1.msra.mxu0 0.0
        %1475 = vmatprep.subr.mxu0 0.0
        %1476 = vmatpush1.msra.mxu0 0.0
        %1477 = vmatprep.subr.mxu0 0.0
        %1478 = vmatpush1.msra.mxu0 0.0
        %1479 = vmatprep.subr.mxu0 0.0
        %1480 = vmatpush1.msra.mxu0 0.0
        %1481 = vmatprep.subr.mxu0 0.0
        %1482 = vmatpush1.msra.mxu0 0.0
        %1483 = vmatprep.subr.mxu0 0.0
        %1484 = vmatpush1.msra.mxu0 0.0
        %1485 = vmatprep.subr.mxu0 0.0
        %1486 = vmatpush1.msra.mxu0 0.0
        %1487 = vmatprep.subr.mxu0 0.0
        %1488 = vmatpush1.msra.mxu0 0.0
        %1489 = vmatprep.subr.mxu0 0.0
        %1490 = vmatpush1.msra.mxu0 0.0
        %1491 = vmatprep.subr.mxu0 0.0
        %1492 = vmatpush1.msra.mxu0 0.0
        %1493 = vmatprep.subr.mxu0 0.0
        %1494 = vmatpush1.msra.mxu0 0.0
        %1495 = vmatprep.subr.mxu0 0.0
        %1496 = vmatpush1.msra.mxu0 0.0
        %1497 = vmatprep.subr.mxu0 0.0
        %1498 = vmatpush1.msra.mxu0 %v1462
        %1499 = vmatprep.subr.mxu0 0.0
        %1500 = vmatpush2.msra.mxu0 0.0
        %1501 = vmatprep.subr.mxu0 0.0
        %1502 = vmatpush2.msra.mxu0 0.0
        %1503 = vmatprep.subr.mxu0 0.0
        %1504 = vmatpush2.msra.mxu0 0.0
        %1505 = vmatprep.subr.mxu0 0.0
        %1506 = vmatpush2.msra.mxu0 0.0
        %1507 = vmatprep.subr.mxu0 0.0
        %1508 = vmatpush2.msra.mxu0 0.0
        %1509 = vmatprep.subr.mxu0 0.0
        %1510 = vmatpush2.msra.mxu0 0.0
        %1511 = vmatprep.subr.mxu0 0.0
        %1512 = vmatpush2.msra.mxu0 0.0
        %1513 = vmatprep.subr.mxu0 0.0
        %1514 = vmatpush2.msra.mxu0 0.0
        %1515 = vmatprep.subr.mxu0 0.0
        %1516 = vmatpush2.msra.mxu0 0.0
        %1517 = vmatprep.subr.mxu0 0.0
        %1518 = vmatpush2.msra.mxu0 0.0
        %1519 = vmatprep.subr.mxu0 0.0
        %1520 = vmatpush2.msra.mxu0 0.0
        %1521 = vmatprep.subr.mxu0 0.0
        %1522 = vmatpush2.msra.mxu0 0.0
        %1523 = vmatprep.subr.mxu0 0.0
        %1524 = vmatpush2.msra.mxu0 0.0
        %1525 = vmatprep.subr.mxu0 0.0
        %1526 = vmatpush2.msra.mxu0 0.0
        %1527 = vmatprep.subr.mxu0 0.0
        %1528 = vmatpush2.msra.mxu0 0.0
        %1529 = vmatprep.subr.mxu0 0.0
        %1530 = vmatpush2.msra.mxu0 0.0
        %1531 = vmatprep.mubr.f32.mxu0 0.0
        %1532 = vmatmul.mubr.f32.gmra.mxu0 %v1465
        %v1533 = vpop.f32.mrf.mxu0
        %v1534 = vadd.f32 0.0, %v1533
        %v1535 = vpop.f32.mrf.mxu0
        %1536 = vdwg.mxu0
        %v1537 = vrcp.pop %v1440
        %v1538 = vmul.f32 %v1534, %v1537
        %v1540 = vcombine.high %v1538, %v1538
        %v1542 = vunpack.c.l.s4 1966171168
        %v1543 = vunpack.c.0.s8 %v1542
        %v1544 = vlaneseq
        %v1545 = vshrl.u32 %v1544, 7
        %v1546 = vsub.s32 %v1543, %v1545
        %v1547 = vrot.slane %v1538, %v1546
        %v1549 = vunpack.c.l.s4 1966171168
        %v1550 = vunpack.c.0.s8 %v1549
        %v1551 = vlaneseq
        %v1552 = vshrl.u32 %v1551, 7
        %v1553 = vsub.s32 %v1550, %v1552
        %v1554 = vrot.slane %v1540, %v1553
        %v1555 = vcombine.high %v1547, %v1547
        %v1556 = vcombine.high %v1554, %v1554
        %v1558 = vunpack.c.l.s4 1966171168
        %v1559 = vunpack.c.0.s8 %v1558
        %v1560 = vlaneseq
        %v1561 = vshrl.u32 %v1560, 7
        %v1562 = vsub.s32 %v1559, %v1561
        %v1563 = vrot.slane %v1547, %v1562
        %v1565 = vunpack.c.l.s4 1966171168
        %v1566 = vunpack.c.0.s8 %v1565
        %v1567 = vlaneseq
        %v1568 = vshrl.u32 %v1567, 7
        %v1569 = vsub.s32 %v1566, %v1568
        %v1570 = vrot.slane %v1554, %v1569
        %v1572 = vunpack.c.l.s4 1966171168
        %v1573 = vunpack.c.0.s8 %v1572
        %v1574 = vlaneseq
        %v1575 = vshrl.u32 %v1574, 7
        %v1576 = vsub.s32 %v1573, %v1575
        %v1577 = vrot.slane %v1555, %v1576
        %v1579 = vunpack.c.l.s4 1966171168
        %v1580 = vunpack.c.0.s8 %v1579
        %v1581 = vlaneseq
        %v1582 = vshrl.u32 %v1581, 7
        %v1583 = vsub.s32 %v1580, %v1582
        %v1584 = vrot.slane %v1556, %v1583
        %v1585 = vcombine.high %v1563, %v1563
        %v1586 = vcombine.high %v1570, %v1570
        %v1587 = vcombine.high %v1577, %v1577
        %v1588 = vcombine.high %v1584, %v1584
        %1597 = vst.msk [vmem:[%s298 + $0x3] sm:$0x1] %vm627, %v1563
        %1598 = vst.msk [vmem:[%s298 + $0x7] sm:$0x1] %vm627, %v1577
        %1599 = vst.msk [vmem:[%s298 + $0xb] sm:$0x1] %vm627, %v1585
        %1600 = vst.msk [vmem:[%s298 + $0xf] sm:$0x1] %vm627, %v1587
        %1601 = vst.msk [vmem:[%s298 + $0x13] sm:$0x1] %vm627, %v1570
        %1602 = vst.msk [vmem:[%s298 + $0x17] sm:$0x1] %vm627, %v1584
        %1603 = vst.msk [vmem:[%s298 + $0x1b] sm:$0x1] %vm627, %v1586
        %1604 = vst.msk [vmem:[%s298 + $0x1f] sm:$0x1] %vm627, %v1588
        %s1605 = sand.u32 %s136, 1
        %s1606 = scalar_lea.sflag [#allocation4], %s1605
        %s1607 = sand.u32 %s136, 1
        %s1608 = smul.addr %s1607, 32
        %s1609 = scalar_lea.vmem [#allocation8], %s1608
        // Predicated region
        $region45: #{tpu_custom_call.1} parent=31 // pred_check
          %p1610 = pneg %p146
        $region46: #{tpu_custom_call.1} parent=31 // pred_check_branch
          %1612 = sbr.rel (%p1610) target = $region48
        $region47: #{tpu_custom_call.1} parent=31 // pred_region
          %s1613 = smul.u32 8, %s29
          %s1615 = ssub.s32 512, 512
          %1616 = vsyncadd %s1606, %s1615
          %s1617 = smul.addr %s28, 8
          %s1618 = sadd.s32 %s1613, %s1617
          %s1619 = smul.addr %s1618, 64
          %s1620 = scalar_lea.hbm %s3, %s1619
          %s1621 = sshll.u32 %s1609, 4
          %s1622 = int_to_ptr.vmem [resolvable:$true] %s1621
          %1627 = dma.vmem_to_hbm [thread:$0]  %s1622, 512, %s1620, %s1606, 64, 64, 4
        $region48: #{tpu_custom_call.1} parent=31 // pred_fallthru
          _
      $region32: #{tpu_custom_call.1} parent=5 // pred_fallthru
        _
      %p1628 = scmp.le.s32.totalorder 2, %s18
      // Predicated region
      $region49: #{tpu_custom_call.1} parent=5 // pred_check
        %p1629 = pneg %p1628
      $region50: #{tpu_custom_call.1} parent=5 // pred_check_branch
        %1631 = sbr.rel (%p1629) target = $region52
      $region51: #{tpu_custom_call.1} parent=5 // pred_region
        %s1632 = ssub.s32 %s18, 2
        // Predicated region
        $region53: #{tpu_custom_call.1} parent=51 // pred_check
          %p1633 = pneg %p152
        $region54: #{tpu_custom_call.1} parent=51 // pred_check_branch
          %1635 = sbr.rel (%p1633) target = $region56
        $region55: #{tpu_custom_call.1} parent=51 // pred_region
          %s1636 = sand.u32 %s137, 1
          %s1637 = scalar_lea.sflag [#allocation4], %s1636
          %s1638 = sand.u32 %s137, 1
          %s1639 = smul.addr %s1638, 32
          %s1640 = scalar_lea.vmem [#allocation8], %s1639
          %1641 = dma.done %s1637, 512
        $region56: #{tpu_custom_call.1} parent=51 // pred_fallthru
          _
      $region52: #{tpu_custom_call.1} parent=5 // pred_fallthru
        _
    $region6: #{tpu_custom_call.1} parent=1 // loop_footer
      %s22 = sadd.s32 1, %s18
    $region7: #{tpu_custom_call.1} parent=1 // loop_footer_branch
      %17 = sbr.rel target = $region3
    $region8: #{tpu_custom_call.1} parent=1 // loop_exit
      _
    %1642 = vsyncpa [#allocation3], 1
    %s1643 = scalar_lea.sflag [#allocation3], 1
    %1644 = vsyncpa %s1643, 1
    %1645 = vsyncpa [#allocation6], 1
    %s1646 = scalar_lea.sflag [#allocation6], 1
    %1647 = vsyncpa %s1646, 1
    %1648 = vsyncpa [#allocation4], 1
    %s1649 = scalar_lea.sflag [#allocation4], 1
    %1650 = vsyncpa %s1649, 1

</llo_original>
